<compile_context>
chip_gen: v6e
topology: v6e:2x2x1
jax: 0.10.0
libtpu: 0.0.40
codegen_flags: <defaults>
</compile_context>

<pallas_src>
import jax
import jax.numpy as jnp
from jax import lax
from jax.experimental import pallas as pl
from jax.experimental.pallas import tpu as pltpu

EPS = 1e-5


def _bn_relu(h, gamma, beta, ones_row, inv_b):
    """Training-mode BatchNorm1d (axis 0, biased var) + ReLU, fused affine.

    h: (B, P) f32 accumulator.  Returns bf16 for the next MXU layer.
    Batch sums go through the MXU ((1,B) @ (B,P)); the (B,P) tensor is swept
    only once more with a fused mul/add (+ ReLU max).
    """
    s = jnp.dot(ones_row, h, preferred_element_type=jnp.float32)        # (1, P)
    s2 = jnp.dot(ones_row, h * h, preferred_element_type=jnp.float32)   # (1, P)
    mean = s * inv_b
    var = jnp.maximum(s2 * inv_b - mean * mean, 0.0)                    # biased var
    scale = gamma * lax.rsqrt(var + EPS)                                # EUP rsqrt
    shift = beta - mean * scale
    out = jnp.maximum(h * scale + shift, 0.0)
    return out.astype(jnp.bfloat16)


def projector_kernel(
    x_ref,                       # (B, D)  bf16
    w1_ref, g1_ref, be1_ref,     # (D, P) bf16, (1, P) f32, (1, P) f32
    w2_ref, g2_ref, be2_ref,     # (P, P) bf16, (1, P) f32, (1, P) f32
    w3_ref, b3_ref,              # (P, P) bf16, (1, P) f32
    o_ref,                       # (B, P)
):
    B = x_ref.shape[0]
    inv_b = jnp.float32(1.0 / B)
    ones_row = jnp.ones((1, B), jnp.float32)   # hoisted once, reused by both BN layers

    # Layer 1: Linear (bias folded away by BN) -> BN -> ReLU
    h = jnp.dot(x_ref[...], w1_ref[...], preferred_element_type=jnp.float32)
    h = _bn_relu(h, g1_ref[...], be1_ref[...], ones_row, inv_b)

    # Layer 2: Linear (bias folded away by BN) -> BN -> ReLU
    h = jnp.dot(h, w2_ref[...], preferred_element_type=jnp.float32)
    h = _bn_relu(h, g2_ref[...], be2_ref[...], ones_row, inv_b)

    # Layer 3: Linear with bias (no BN after it)
    h = jnp.dot(h, w3_ref[...], preferred_element_type=jnp.float32) + b3_ref[...]

    o_ref[...] = h.astype(o_ref.dtype)


def projector_forward(x, params, out_dtype=jnp.float32):
    """x: (B, D) float32/bfloat16.  params: dict from init_params (f32).

    Matmul operands are cast to bf16 (halves HBM->VMEM traffic, native bf16
    MXU); in production store the weights in bf16 directly.  Set
    out_dtype=jnp.bfloat16 if downstream tolerates it (halves writeback DMA).
    """
    B, D = x.shape
    P = params["w1"].shape[1]

    args = (
        x.astype(jnp.bfloat16),
        params["w1"].astype(jnp.bfloat16), params["g1"], params["be1"],
        params["w2"].astype(jnp.bfloat16), params["g2"], params["be2"],
        params["w3"].astype(jnp.bfloat16), params["b3"],
    )

    # Rough single-block working-set estimate (inputs + output + live f32 acts).
    bytes_in = int(sum(a.size * a.dtype.itemsize for a in args))
    bytes_out = int(B * P * jnp.dtype(out_dtype).itemsize)
    bytes_act = 3 * B * P * 4
    vmem_est = bytes_in + bytes_out + bytes_act
    budget = 56 * 1024 * 1024  # headroom under v7x's 64 MiB physical VMEM
    if vmem_est > budget:
        raise NotImplementedError(
            f"working set ~{vmem_est / 2**20:.1f} MiB exceeds the single-block "
            "VMEM budget; needs the feature-tiled / per-layer path (see TODO)."
        )

    vmem = pl.BlockSpec(memory_space=pltpu.MemorySpace.VMEM)
    flops = 2 * B * P * (D + 2 * P) + 8 * B * P  # 3 layer matmuls + BN stat matmuls
    return pl.pallas_call(
        projector_kernel,
        out_shape=jax.ShapeDtypeStruct((B, P), out_dtype),
        in_specs=[vmem] * len(args),
        out_specs=vmem,
        compiler_params=pltpu.CompilerParams(
            vmem_limit_bytes=min(max(2 * vmem_est, 16 * 1024 * 1024), budget)),
        cost_estimate=pl.CostEstimate(
            flops=flops, transcendentals=2 * P,
            bytes_accessed=bytes_in + bytes_out),
    )(*args)


def init_params(key, D, proj_dim):
    """PyTorch-style init (Kaiming-uniform Linear, gamma=1 / beta=0 for BN).
    Weights stored as (in, out) in f32; b1/b2 are generated only for the pure
    PyTorch-semantics reference (the kernel omits them: BN cancels them)."""
    ks = jax.random.split(key, 6)

    def linear(kw, kb, fan_in, fan_out):
        bound = 1.0 / jnp.sqrt(fan_in)
        w = jax.random.uniform(kw, (fan_in, fan_out), jnp.float32, -bound, bound)
        b = jax.random.uniform(kb, (1, fan_out), jnp.float32, -bound, bound)
        return w, b

    w1, b1 = linear(ks[0], ks[1], D, proj_dim)
    w2, b2 = linear(ks[2], ks[3], proj_dim, proj_dim)
    w3, b3 = linear(ks[4], ks[5], proj_dim, proj_dim)
    ones = jnp.ones((1, proj_dim), jnp.float32)
    zeros = jnp.zeros((1, proj_dim), jnp.float32)
    return {
        "w1": w1, "b1": b1, "g1": ones, "be1": zeros,
        "w2": w2, "b2": b2, "g2": ones, "be2": zeros,
        "w3": w3, "b3": b3,
    }


def projector_reference_f32(x, p):
    """Pure-f32 reference matching the PyTorch module literally (with b1/b2)."""
    def bn_relu(h, g, b):
        m = jnp.mean(h, axis=0, keepdims=True)
        v = jnp.mean((h - m) ** 2, axis=0, keepdims=True)
        return jnp.maximum((h - m) / jnp.sqrt(v + EPS) * g + b, 0.0)

    h = bn_relu(x @ p["w1"] + p["b1"], p["g1"], p["be1"])
    h = bn_relu(h @ p["w2"] + p["b2"], p["g2"], p["be2"])
    return h @ p["w3"] + p["b3"]


def projector_reference_mixed(x, p):
    """Reference mirroring the kernel's bf16-operand / f32-accumulate math."""
    bf = jnp.bfloat16

    def dot(a, b):
        return jnp.dot(a.astype(bf), b.astype(bf),
                       preferred_element_type=jnp.float32)

    def bn_relu(h, g, b):
        m = jnp.mean(h, axis=0, keepdims=True)
        v = jnp.maximum(jnp.mean(h * h, axis=0, keepdims=True) - m * m, 0.0)
        scale = g * lax.rsqrt(v + EPS)
        return jnp.maximum(h * scale + (b - m * scale), 0.0)

    h = bn_relu(dot(x, p["w1"]), p["g1"], p["be1"])   # b1 dropped (BN cancels it)
    h = bn_relu(dot(h, p["w2"]), p["g2"], p["be2"])   # b2 dropped (BN cancels it)
    return dot(h, p["w3"]) + p["b3"]


if __name__ == "__main__":
    # MXU-friendly small shapes: B, D, P all multiples of 128.
    B, D, PROJ = 128, 128, 256

    key = jax.random.PRNGKey(0)
    kx, kp = jax.random.split(key)
    x = jax.random.normal(kx, (B, D), jnp.float32)
    params = init_params(kp, D, PROJ)

    out = jax.block_until_ready(projector_forward(x, params))
    assert out.shape == (B, PROJ), out.shape

    # Tight check against a reference with identical bf16/f32 mixed precision.
    ref_mixed = projector_reference_mixed(x, params)
    err_mixed = float(jnp.max(jnp.abs(out - ref_mixed)))
    assert jnp.allclose(out, ref_mixed, atol=2e-3, rtol=2e-3), err_mixed

    # Loose sanity check against the full-f32 PyTorch-semantics reference
    # (includes b1/b2, unfused BN) -- differences are only bf16 quantization.
    ref_f32 = projector_reference_f32(x, params)
    err_f32 = float(jnp.max(jnp.abs(out - ref_f32)))
    assert err_f32 < 0.2, err_f32

    print("KERNEL_OK")
</pallas_src>

<mosaic_0001>
module attributes {stable_mosaic.version = 11 : i64} {
  func.func @projector_kernel(%arg0: memref<128x128xbf16, #tpu.memory_space<vmem>>, %arg1: memref<128x256xbf16, #tpu.memory_space<vmem>>, %arg2: memref<1x256xf32, #tpu.memory_space<vmem>>, %arg3: memref<1x256xf32, #tpu.memory_space<vmem>>, %arg4: memref<256x256xbf16, #tpu.memory_space<vmem>>, %arg5: memref<1x256xf32, #tpu.memory_space<vmem>>, %arg6: memref<1x256xf32, #tpu.memory_space<vmem>>, %arg7: memref<256x256xbf16, #tpu.memory_space<vmem>>, %arg8: memref<1x256xf32, #tpu.memory_space<vmem>>, %arg9: memref<128x256xf32, #tpu.memory_space<vmem>>) attributes {dimension_semantics = [], scalar_prefetch = 0 : i64, scratch_operands = 0 : i64, tpu.core_type = #tpu.core_type<tc>} {
    %cst = arith.constant 1.000000e+00 : f32
    %0 = vector.broadcast %cst : f32 to vector<1x128xf32>
    %c0 = arith.constant 0 : index
    %c0_0 = arith.constant 0 : index
    %1 = vector.load %arg0[%c0, %c0_0] : memref<128x128xbf16, #tpu.memory_space<vmem>>, vector<128x128xbf16>
    %c0_1 = arith.constant 0 : index
    %c0_2 = arith.constant 0 : index
    %2 = vector.load %arg1[%c0_1, %c0_2] : memref<128x256xbf16, #tpu.memory_space<vmem>>, vector<128x256xbf16>
    %cst_3 = arith.constant dense<0.000000e+00> : vector<128x256xf32>
    %3 = tpu.matmul %1, %2, %cst_3 {dimension_numbers = #tpu.dot_dimension_numbers<[1], [0], [0], [1], [0, 0, 1, 1], [], []>} : vector<128x128xbf16>, vector<128x256xbf16>, vector<128x256xf32> -> vector<128x256xf32>
    %c0_4 = arith.constant 0 : index
    %c0_5 = arith.constant 0 : index
    %4 = vector.load %arg2[%c0_4, %c0_5] : memref<1x256xf32, #tpu.memory_space<vmem>>, vector<1x256xf32>
    %c0_6 = arith.constant 0 : index
    %c0_7 = arith.constant 0 : index
    %5 = vector.load %arg3[%c0_6, %c0_7] : memref<1x256xf32, #tpu.memory_space<vmem>>, vector<1x256xf32>
    %cst_8 = arith.constant dense<0.000000e+00> : vector<1x256xf32>
    %6 = tpu.matmul %0, %3, %cst_8 {dimension_numbers = #tpu.dot_dimension_numbers<[1], [0], [0], [1], [0, 0, 1, 1], [], []>} : vector<1x128xf32>, vector<128x256xf32>, vector<1x256xf32> -> vector<1x256xf32>
    %7 = arith.mulf %3, %3 : vector<128x256xf32>
    %cst_9 = arith.constant dense<0.000000e+00> : vector<1x256xf32>
    %8 = tpu.matmul %0, %7, %cst_9 {dimension_numbers = #tpu.dot_dimension_numbers<[1], [0], [0], [1], [0, 0, 1, 1], [], []>} : vector<1x128xf32>, vector<128x256xf32>, vector<1x256xf32> -> vector<1x256xf32>
    %cst_10 = arith.constant 7.812500e-03 : f32
    %9 = vector.broadcast %cst_10 : f32 to vector<1x256xf32>
    %10 = arith.mulf %6, %9 : vector<1x256xf32>
    %cst_11 = arith.constant 7.812500e-03 : f32
    %11 = vector.broadcast %cst_11 : f32 to vector<1x256xf32>
    %12 = arith.mulf %8, %11 : vector<1x256xf32>
    %13 = arith.mulf %10, %10 : vector<1x256xf32>
    %14 = arith.subf %12, %13 : vector<1x256xf32>
    %cst_12 = arith.constant 0.000000e+00 : f32
    %15 = vector.broadcast %cst_12 : f32 to vector<1x256xf32>
    %16 = arith.maximumf %14, %15 : vector<1x256xf32>
    %cst_13 = arith.constant 9.99999974E-6 : f32
    %17 = vector.broadcast %cst_13 : f32 to vector<1x256xf32>
    %18 = arith.addf %16, %17 : vector<1x256xf32>
    %19 = math.rsqrt %18 : vector<1x256xf32>
    %20 = arith.mulf %4, %19 : vector<1x256xf32>
    %21 = arith.mulf %10, %20 : vector<1x256xf32>
    %22 = arith.subf %5, %21 : vector<1x256xf32>
    %23 = vector.broadcast %20 : vector<1x256xf32> to vector<128x256xf32>
    %24 = arith.mulf %3, %23 : vector<128x256xf32>
    %25 = vector.broadcast %22 : vector<1x256xf32> to vector<128x256xf32>
    %26 = arith.addf %24, %25 : vector<128x256xf32>
    %cst_14 = arith.constant 0.000000e+00 : f32
    %27 = vector.broadcast %cst_14 : f32 to vector<128x256xf32>
    %28 = arith.maximumf %26, %27 : vector<128x256xf32>
    %29 = arith.truncf %28 : vector<128x256xf32> to vector<128x256xbf16>
    %c0_15 = arith.constant 0 : index
    %c0_16 = arith.constant 0 : index
    %30 = vector.load %arg4[%c0_15, %c0_16] : memref<256x256xbf16, #tpu.memory_space<vmem>>, vector<256x256xbf16>
    %cst_17 = arith.constant dense<0.000000e+00> : vector<128x256xf32>
    %31 = tpu.matmul %29, %30, %cst_17 {dimension_numbers = #tpu.dot_dimension_numbers<[1], [0], [0], [1], [0, 0, 1, 1], [], []>} : vector<128x256xbf16>, vector<256x256xbf16>, vector<128x256xf32> -> vector<128x256xf32>
    %c0_18 = arith.constant 0 : index
    %c0_19 = arith.constant 0 : index
    %32 = vector.load %arg5[%c0_18, %c0_19] : memref<1x256xf32, #tpu.memory_space<vmem>>, vector<1x256xf32>
    %c0_20 = arith.constant 0 : index
    %c0_21 = arith.constant 0 : index
    %33 = vector.load %arg6[%c0_20, %c0_21] : memref<1x256xf32, #tpu.memory_space<vmem>>, vector<1x256xf32>
    %cst_22 = arith.constant dense<0.000000e+00> : vector<1x256xf32>
    %34 = tpu.matmul %0, %31, %cst_22 {dimension_numbers = #tpu.dot_dimension_numbers<[1], [0], [0], [1], [0, 0, 1, 1], [], []>} : vector<1x128xf32>, vector<128x256xf32>, vector<1x256xf32> -> vector<1x256xf32>
    %35 = arith.mulf %31, %31 : vector<128x256xf32>
    %cst_23 = arith.constant dense<0.000000e+00> : vector<1x256xf32>
    %36 = tpu.matmul %0, %35, %cst_23 {dimension_numbers = #tpu.dot_dimension_numbers<[1], [0], [0], [1], [0, 0, 1, 1], [], []>} : vector<1x128xf32>, vector<128x256xf32>, vector<1x256xf32> -> vector<1x256xf32>
    %cst_24 = arith.constant 7.812500e-03 : f32
    %37 = vector.broadcast %cst_24 : f32 to vector<1x256xf32>
    %38 = arith.mulf %34, %37 : vector<1x256xf32>
    %cst_25 = arith.constant 7.812500e-03 : f32
    %39 = vector.broadcast %cst_25 : f32 to vector<1x256xf32>
    %40 = arith.mulf %36, %39 : vector<1x256xf32>
    %41 = arith.mulf %38, %38 : vector<1x256xf32>
    %42 = arith.subf %40, %41 : vector<1x256xf32>
    %cst_26 = arith.constant 0.000000e+00 : f32
    %43 = vector.broadcast %cst_26 : f32 to vector<1x256xf32>
    %44 = arith.maximumf %42, %43 : vector<1x256xf32>
    %cst_27 = arith.constant 9.99999974E-6 : f32
    %45 = vector.broadcast %cst_27 : f32 to vector<1x256xf32>
    %46 = arith.addf %44, %45 : vector<1x256xf32>
    %47 = math.rsqrt %46 : vector<1x256xf32>
    %48 = arith.mulf %32, %47 : vector<1x256xf32>
    %49 = arith.mulf %38, %48 : vector<1x256xf32>
    %50 = arith.subf %33, %49 : vector<1x256xf32>
    %51 = vector.broadcast %48 : vector<1x256xf32> to vector<128x256xf32>
    %52 = arith.mulf %31, %51 : vector<128x256xf32>
    %53 = vector.broadcast %50 : vector<1x256xf32> to vector<128x256xf32>
    %54 = arith.addf %52, %53 : vector<128x256xf32>
    %cst_28 = arith.constant 0.000000e+00 : f32
    %55 = vector.broadcast %cst_28 : f32 to vector<128x256xf32>
    %56 = arith.maximumf %54, %55 : vector<128x256xf32>
    %57 = arith.truncf %56 : vector<128x256xf32> to vector<128x256xbf16>
    %c0_29 = arith.constant 0 : index
    %c0_30 = arith.constant 0 : index
    %58 = vector.load %arg7[%c0_29, %c0_30] : memref<256x256xbf16, #tpu.memory_space<vmem>>, vector<256x256xbf16>
    %cst_31 = arith.constant dense<0.000000e+00> : vector<128x256xf32>
    %59 = tpu.matmul %57, %58, %cst_31 {dimension_numbers = #tpu.dot_dimension_numbers<[1], [0], [0], [1], [0, 0, 1, 1], [], []>} : vector<128x256xbf16>, vector<256x256xbf16>, vector<128x256xf32> -> vector<128x256xf32>
    %c0_32 = arith.constant 0 : index
    %c0_33 = arith.constant 0 : index
    %60 = vector.load %arg8[%c0_32, %c0_33] : memref<1x256xf32, #tpu.memory_space<vmem>>, vector<1x256xf32>
    %61 = vector.broadcast %60 : vector<1x256xf32> to vector<128x256xf32>
    %62 = arith.addf %59, %61 : vector<128x256xf32>
    %c0_34 = arith.constant 0 : index
    %c0_35 = arith.constant 0 : index
    %63 = vector.load %arg9[%c0_34, %c0_35] : memref<128x256xf32, #tpu.memory_space<vmem>>, vector<128x256xf32>
    tpu.vector_store %arg9[%c0_34, %c0_35], %62 {strides = array<i32>} : memref<128x256xf32, #tpu.memory_space<vmem>>, vector<128x256xf32>,
    return
  }
}

</mosaic_0001>

<llo_original>
// kernel: tpu_custom_call.1
$region0: #{tpu_custom_call.1}
  #allocation0 [shape = 'u32[]', space=smem, size = 0x4, offset = 0x4, fixed_abs, tag = 'smem constant byte address 0x4 - core index']
  #allocation1 [shape = 'u32[144,128]{1,0:T(1,128)}', space=vmem, size = 0x12000, scoped, tag = 'internal scratch']
  %s0 = inlined_call_operand.hbm [shape: bf16[128,128], index: 0, kind: input, shape index: {}]
  %s1 = inlined_call_operand.hbm [shape: bf16[128,256], index: 1, kind: input, shape index: {}]
  %s2 = inlined_call_operand.vmem [shape: f32[1,256], index: 2, kind: input, shape index: {}]
  %s3 = inlined_call_operand.vmem [shape: f32[1,256], index: 3, kind: input, shape index: {}]
  %s4 = inlined_call_operand.hbm [shape: bf16[256,256], index: 4, kind: input, shape index: {}]
  %s5 = inlined_call_operand.vmem [shape: f32[1,256], index: 5, kind: input, shape index: {}]
  %s6 = inlined_call_operand.vmem [shape: f32[1,256], index: 6, kind: input, shape index: {}]
  %s7 = inlined_call_operand.hbm [shape: bf16[256,256], index: 7, kind: input, shape index: {}]
  %s8 = inlined_call_operand.vmem [shape: f32[1,256], index: 8, kind: input, shape index: {}]
  %s9 = inlined_call_operand.hbm [shape: f32[128,256], index: 9, kind: output, shape index: {}]
  %s10 = sld [smem:[#allocation0]]
  $region62: #{tpu_custom_call.1} parent=0
    _
  %s12 = ssub.s32 1, %s10
  %s13 = scalar_select 0, %s12, %s10
  $region1: #{tpu_custom_call.1} parent=0
    #allocation2 [shape = 'u8[32768]{0}', space=vmem, size = 0x8000, scoped, tag = 'input window, operand 0, single buffered']
    #allocation3 [shape = 's32[1]{0}', space=sflag, size = 0x4, scoped, tag = 'scoped memory for tpu_custom_call.1']
    #allocation4 [shape = 's32[1]{0}', space=sflag, size = 0x4, scoped, tag = 'scoped memory for tpu_custom_call.1']
    #allocation5 [shape = 'u8[65536]{0}', space=vmem, size = 0x10000, scoped, tag = 'input window, operand 1, single buffered']
    #allocation6 [shape = 's32[1]{0}', space=sflag, size = 0x4, scoped, tag = 'scoped memory for tpu_custom_call.1']
    #allocation7 [shape = 'u8[131072]{0}', space=vmem, size = 0x20000, scoped, tag = 'input window, operand 4, single buffered']
    #allocation8 [shape = 'u8[131072]{0}', space=vmem, size = 0x20000, scoped, tag = 'input window, operand 7, single buffered']
    #allocation9 [shape = 's32[1]{0}', space=sflag, size = 0x4, scoped, tag = 'scoped memory for tpu_custom_call.1']
    #allocation10 [shape = 'u8[131072]{0}', space=vmem, size = 0x20000, scoped, tag = 'output window, operand 0, single buffered']
    %14 = vsyncpa [#allocation3], 0
    %15 = vsyncpa [#allocation6], 0
    %16 = vsyncpa [#allocation9], 0
    %17 = vsyncpa [#allocation4], 0
    // Predicated region
    $region2: #{tpu_custom_call.1} parent=1 // pred_check
      _
    $region3: #{tpu_custom_call.1} parent=1 // pred_check_branch
      %19 = sbr.rel (0) target = $region5
    $region4: #{tpu_custom_call.1} parent=1 // pred_region
      %s21 = ssub.s32 1024, 1024
      %22 = vsyncadd [#allocation3], %s21
      %s23 = sshll.u32 [#allocation2], 4
      %s24 = int_to_ptr.vmem [resolvable:$true] %s23
      %29 = dma.hbm_to_vmem [thread:$0]  %s0, 1024, %s24, [#allocation3], 64, 64, 4
    $region5: #{tpu_custom_call.1} parent=1 // pred_fallthru
      _
    // Predicated region
    $region6: #{tpu_custom_call.1} parent=1 // pred_check
      _
    $region7: #{tpu_custom_call.1} parent=1 // pred_check_branch
      %31 = sbr.rel (0) target = $region9
    $region8: #{tpu_custom_call.1} parent=1 // pred_region
      %s33 = ssub.s32 2048, 2048
      %34 = vsyncadd [#allocation6], %s33
      %s35 = sshll.u32 [#allocation5], 4
      %s36 = int_to_ptr.vmem [resolvable:$true] %s35
      %41 = dma.hbm_to_vmem [thread:$0]  %s1, 2048, %s36, [#allocation6], 128, 128, 8
    $region9: #{tpu_custom_call.1} parent=1 // pred_fallthru
      _
    // Predicated region
    $region10: #{tpu_custom_call.1} parent=1 // pred_check
      _
    $region11: #{tpu_custom_call.1} parent=1 // pred_check_branch
      %43 = sbr.rel (0) target = $region13
    $region12: #{tpu_custom_call.1} parent=1 // pred_region
      _
    $region13: #{tpu_custom_call.1} parent=1 // pred_fallthru
      _
    // Predicated region
    $region14: #{tpu_custom_call.1} parent=1 // pred_check
      _
    $region15: #{tpu_custom_call.1} parent=1 // pred_check_branch
      %45 = sbr.rel (0) target = $region17
    $region16: #{tpu_custom_call.1} parent=1 // pred_region
      _
    $region17: #{tpu_custom_call.1} parent=1 // pred_fallthru
      _
    // Predicated region
    $region18: #{tpu_custom_call.1} parent=1 // pred_check
      _
    $region19: #{tpu_custom_call.1} parent=1 // pred_check_branch
      %47 = sbr.rel (0) target = $region21
    $region20: #{tpu_custom_call.1} parent=1 // pred_region
      %s49 = ssub.s32 4096, 4096
      %50 = vsyncadd [#allocation6], %s49
      %s51 = sshll.u32 [#allocation7], 4
      %s52 = int_to_ptr.vmem [resolvable:$true] %s51
      %57 = dma.hbm_to_vmem [thread:$0]  %s4, 4096, %s52, [#allocation6], 128, 128, 8
    $region21: #{tpu_custom_call.1} parent=1 // pred_fallthru
      _
    // Predicated region
    $region22: #{tpu_custom_call.1} parent=1 // pred_check
      _
    $region23: #{tpu_custom_call.1} parent=1 // pred_check_branch
      %59 = sbr.rel (0) target = $region25
    $region24: #{tpu_custom_call.1} parent=1 // pred_region
      _
    $region25: #{tpu_custom_call.1} parent=1 // pred_fallthru
      _
    // Predicated region
    $region26: #{tpu_custom_call.1} parent=1 // pred_check
      _
    $region27: #{tpu_custom_call.1} parent=1 // pred_check_branch
      %61 = sbr.rel (0) target = $region29
    $region28: #{tpu_custom_call.1} parent=1 // pred_region
      _
    $region29: #{tpu_custom_call.1} parent=1 // pred_fallthru
      _
    // Predicated region
    $region30: #{tpu_custom_call.1} parent=1 // pred_check
      _
    $region31: #{tpu_custom_call.1} parent=1 // pred_check_branch
      %63 = sbr.rel (0) target = $region33
    $region32: #{tpu_custom_call.1} parent=1 // pred_region
      %s65 = ssub.s32 4096, 4096
      %66 = vsyncadd [#allocation9], %s65
      %s67 = sshll.u32 [#allocation8], 4
      %s68 = int_to_ptr.vmem [resolvable:$true] %s67
      %73 = dma.hbm_to_vmem [thread:$0]  %s7, 4096, %s68, [#allocation9], 128, 128, 8
    $region33: #{tpu_custom_call.1} parent=1 // pred_fallthru
      _
    // Predicated region
    $region34: #{tpu_custom_call.1} parent=1 // pred_check
      _
    $region35: #{tpu_custom_call.1} parent=1 // pred_check_branch
      %75 = sbr.rel (0) target = $region37
    $region36: #{tpu_custom_call.1} parent=1 // pred_region
      _
    $region37: #{tpu_custom_call.1} parent=1 // pred_fallthru
      _
    // Predicated region
    $region38: #{tpu_custom_call.1} parent=1 // pred_check
      _
    $region39: #{tpu_custom_call.1} parent=1 // pred_check_branch
      %77 = sbr.rel (0) target = $region41
    $region40: #{tpu_custom_call.1} parent=1 // pred_region
      %78 = dma.done [#allocation3], 1024
    $region41: #{tpu_custom_call.1} parent=1 // pred_fallthru
      _
    // Predicated region
    $region42: #{tpu_custom_call.1} parent=1 // pred_check
      _
    $region43: #{tpu_custom_call.1} parent=1 // pred_check_branch
      %80 = sbr.rel (0) target = $region45
    $region44: #{tpu_custom_call.1} parent=1 // pred_region
      %81 = dma.done [#allocation6], 2048
    $region45: #{tpu_custom_call.1} parent=1 // pred_fallthru
      _
    // Predicated region
    $region46: #{tpu_custom_call.1} parent=1 // pred_check
      _
    $region47: #{tpu_custom_call.1} parent=1 // pred_check_branch
      %83 = sbr.rel (0) target = $region49
    $region48: #{tpu_custom_call.1} parent=1 // pred_region
      %84 = dma.done [#allocation6], 4096
    $region49: #{tpu_custom_call.1} parent=1 // pred_fallthru
      _
    // Predicated region
    $region50: #{tpu_custom_call.1} parent=1 // pred_check
      _
    $region51: #{tpu_custom_call.1} parent=1 // pred_check_branch
      %86 = sbr.rel (0) target = $region53
    $region52: #{tpu_custom_call.1} parent=1 // pred_region
      %87 = dma.done [#allocation9], 4096
    $region53: #{tpu_custom_call.1} parent=1 // pred_fallthru
      _
    %v89 = vld [vmem:[#allocation2] sm:$0xf]
    %v90 = vld [vmem:[#allocation2 + $0x4] sm:$0xf]
    %v91 = vld [vmem:[#allocation2 + $0x8] sm:$0xf]
    %v92 = vld [vmem:[#allocation2 + $0xc] sm:$0xf]
    %v93 = vld [vmem:[#allocation2 + $0x10] sm:$0xf]
    %v94 = vld [vmem:[#allocation2 + $0x14] sm:$0xf]
    %v95 = vld [vmem:[#allocation2 + $0x18] sm:$0xf]
    %v96 = vld [vmem:[#allocation2 + $0x1c] sm:$0xf]
    %v97 = vld [vmem:[#allocation2 + $0x20] sm:$0xf]
    %v98 = vld [vmem:[#allocation2 + $0x24] sm:$0xf]
    %v99 = vld [vmem:[#allocation2 + $0x28] sm:$0xf]
    %v100 = vld [vmem:[#allocation2 + $0x2c] sm:$0xf]
    %v101 = vld [vmem:[#allocation2 + $0x30] sm:$0xf]
    %v102 = vld [vmem:[#allocation2 + $0x34] sm:$0xf]
    %v103 = vld [vmem:[#allocation2 + $0x38] sm:$0xf]
    %v104 = vld [vmem:[#allocation2 + $0x3c] sm:$0xf]
    %v105 = vld [vmem:[#allocation5] sm:$0xff]
    %v106 = vld [vmem:[#allocation5 + $0x8] sm:$0xff]
    %v107 = vld [vmem:[#allocation5 + $0x10] sm:$0xff]
    %v108 = vld [vmem:[#allocation5 + $0x18] sm:$0xff]
    %v109 = vld [vmem:[#allocation5 + $0x20] sm:$0xff]
    %v110 = vld [vmem:[#allocation5 + $0x28] sm:$0xff]
    %v111 = vld [vmem:[#allocation5 + $0x30] sm:$0xff]
    %v112 = vld [vmem:[#allocation5 + $0x38] sm:$0xff]
    %v113 = vld [vmem:[#allocation5 + $0x40] sm:$0xff]
    %v114 = vld [vmem:[#allocation5 + $0x48] sm:$0xff]
    %v115 = vld [vmem:[#allocation5 + $0x50] sm:$0xff]
    %v116 = vld [vmem:[#allocation5 + $0x58] sm:$0xff]
    %v117 = vld [vmem:[#allocation5 + $0x60] sm:$0xff]
    %v118 = vld [vmem:[#allocation5 + $0x68] sm:$0xff]
    %v119 = vld [vmem:[#allocation5 + $0x70] sm:$0xff]
    %v120 = vld [vmem:[#allocation5 + $0x78] sm:$0xff]
    %v137 = vunpack.c.l.b16 %v89
    %v138 = vunpack.c.l.b16 %v90
    %v139 = vunpack.c.l.b16 %v91
    %v140 = vunpack.c.l.b16 %v92
    %v141 = vunpack.c.l.b16 %v93
    %v142 = vunpack.c.l.b16 %v94
    %v143 = vunpack.c.l.b16 %v95
    %v144 = vunpack.c.l.b16 %v96
    %v145 = vunpack.c.l.b16 %v97
    %v146 = vunpack.c.l.b16 %v98
    %v147 = vunpack.c.l.b16 %v99
    %v148 = vunpack.c.l.b16 %v100
    %v149 = vunpack.c.l.b16 %v101
    %v150 = vunpack.c.l.b16 %v102
    %v151 = vunpack.c.l.b16 %v103
    %v152 = vunpack.c.l.b16 %v104
    %v153 = vpack.c.b16 %v138, %v137
    %v154 = vpack.c.b16 %v140, %v139
    %v155 = vpack.c.b16 %v142, %v141
    %v156 = vpack.c.b16 %v144, %v143
    %v157 = vpack.c.b16 %v146, %v145
    %v158 = vpack.c.b16 %v148, %v147
    %v159 = vpack.c.b16 %v150, %v149
    %v160 = vpack.c.b16 %v152, %v151
    %v185 = vunpack.c.l.b16 %v105
    %v186 = vunpack.c.h.b16 %v105
    %v187 = vunpack.c.l.b16 %v106
    %v188 = vunpack.c.h.b16 %v106
    %v189 = vunpack.c.l.b16 %v107
    %v190 = vunpack.c.h.b16 %v107
    %v191 = vunpack.c.l.b16 %v108
    %v192 = vunpack.c.h.b16 %v108
    %v193 = vunpack.c.l.b16 %v109
    %v194 = vunpack.c.h.b16 %v109
    %v195 = vunpack.c.l.b16 %v110
    %v196 = vunpack.c.h.b16 %v110
    %v197 = vunpack.c.l.b16 %v111
    %v198 = vunpack.c.h.b16 %v111
    %v199 = vunpack.c.l.b16 %v112
    %v200 = vunpack.c.h.b16 %v112
    %v201 = vunpack.c.l.b16 %v113
    %v202 = vunpack.c.h.b16 %v113
    %v203 = vunpack.c.l.b16 %v114
    %v204 = vunpack.c.h.b16 %v114
    %v205 = vunpack.c.l.b16 %v115
    %v206 = vunpack.c.h.b16 %v115
    %v207 = vunpack.c.l.b16 %v116
    %v208 = vunpack.c.h.b16 %v116
    %v209 = vunpack.c.l.b16 %v117
    %v210 = vunpack.c.h.b16 %v117
    %v211 = vunpack.c.l.b16 %v118
    %v212 = vunpack.c.h.b16 %v118
    %v213 = vunpack.c.l.b16 %v119
    %v214 = vunpack.c.h.b16 %v119
    %v215 = vunpack.c.l.b16 %v120
    %v216 = vunpack.c.h.b16 %v120
    %v217 = vpack.c.b16 %v187, %v185
    %v218 = vpack.c.b16 %v188, %v186
    %v219 = vpack.c.b16 %v191, %v189
    %v220 = vpack.c.b16 %v192, %v190
    %v221 = vpack.c.b16 %v195, %v193
    %v222 = vpack.c.b16 %v196, %v194
    %v223 = vpack.c.b16 %v199, %v197
    %v224 = vpack.c.b16 %v200, %v198
    %v225 = vpack.c.b16 %v203, %v201
    %v226 = vpack.c.b16 %v204, %v202
    %v227 = vpack.c.b16 %v207, %v205
    %v228 = vpack.c.b16 %v208, %v206
    %v229 = vpack.c.b16 %v211, %v209
    %v230 = vpack.c.b16 %v212, %v210
    %v231 = vpack.c.b16 %v215, %v213
    %v232 = vpack.c.b16 %v216, %v214
    %249 = vmatprep.subr.bf16.mxu0 %v232
    %250 = vmatpush1.bf16.msra.mxu0 %v231
    %251 = vmatprep.subr.bf16.mxu0 %v230
    %252 = vmatpush1.bf16.msra.mxu0 %v229
    %253 = vmatprep.subr.bf16.mxu0 %v228
    %254 = vmatpush1.bf16.msra.mxu0 %v227
    %255 = vmatprep.subr.bf16.mxu0 %v226
    %256 = vmatpush1.bf16.msra.mxu0 %v225
    %257 = vmatprep.subr.bf16.mxu0 %v224
    %258 = vmatpush1.bf16.msra.mxu0 %v223
    %259 = vmatprep.subr.bf16.mxu0 %v222
    %260 = vmatpush1.bf16.msra.mxu0 %v221
    %261 = vmatprep.subr.bf16.mxu0 %v220
    %262 = vmatpush1.bf16.msra.mxu0 %v219
    %263 = vmatprep.subr.bf16.mxu0 %v218
    %264 = vmatpush1.bf16.msra.mxu0 %v217
    %265 = vmatprep.subr.bf16.mxu0 0
    %266 = vmatpush2.bf16.msra.mxu0 0
    %267 = vmatprep.subr.bf16.mxu0 0
    %268 = vmatpush2.bf16.msra.mxu0 0
    %269 = vmatprep.subr.bf16.mxu0 0
    %270 = vmatpush2.bf16.msra.mxu0 0
    %271 = vmatprep.subr.bf16.mxu0 0
    %272 = vmatpush2.bf16.msra.mxu0 0
    %273 = vmatprep.subr.bf16.mxu0 0
    %274 = vmatpush2.bf16.msra.mxu0 0
    %275 = vmatprep.subr.bf16.mxu0 0
    %276 = vmatpush2.bf16.msra.mxu0 0
    %277 = vmatprep.subr.bf16.mxu0 0
    %278 = vmatpush2.bf16.msra.mxu0 0
    %279 = vmatprep.subr.bf16.mxu0 0
    %280 = vmatpush2.bf16.msra.mxu0 0
    %281 = vmatprep.mubr.bf16.mxu0 0
    %282 = vmatmul.mubr.bf16.gmra.mxu0 %v153
    %v283 = vpop.f32.mrf.mxu0
    %v284 = vadd.f32 0.0, %v283
    %v285 = vpop.f32.mrf.mxu0
    %v286 = vadd.f32 0.0, %v285
    %v287 = vpop.f32.mrf.mxu0
    %v288 = vadd.f32 0.0, %v287
    %v289 = vpop.f32.mrf.mxu0
    %v290 = vadd.f32 0.0, %v289
    %291 = vmatprep.mubr.bf16.mxu0 0
    %292 = vmatmul.mubr.bf16.gmra.mxu0 %v154
    %v293 = vpop.f32.mrf.mxu0
    %v294 = vadd.f32 0.0, %v293
    %v295 = vpop.f32.mrf.mxu0
    %v296 = vadd.f32 0.0, %v295
    %v297 = vpop.f32.mrf.mxu0
    %v298 = vadd.f32 0.0, %v297
    %v299 = vpop.f32.mrf.mxu0
    %v300 = vadd.f32 0.0, %v299
    %301 = vmatprep.mubr.bf16.mxu0 0
    %302 = vmatmul.mubr.bf16.gmra.mxu0 %v155
    %v303 = vpop.f32.mrf.mxu0
    %v304 = vadd.f32 0.0, %v303
    %v305 = vpop.f32.mrf.mxu0
    %v306 = vadd.f32 0.0, %v305
    %v307 = vpop.f32.mrf.mxu0
    %v308 = vadd.f32 0.0, %v307
    %v309 = vpop.f32.mrf.mxu0
    %v310 = vadd.f32 0.0, %v309
    %311 = vmatprep.mubr.bf16.mxu0 0
    %312 = vmatmul.mubr.bf16.gmra.mxu0 %v156
    %v313 = vpop.f32.mrf.mxu0
    %v314 = vadd.f32 0.0, %v313
    %v315 = vpop.f32.mrf.mxu0
    %v316 = vadd.f32 0.0, %v315
    %v317 = vpop.f32.mrf.mxu0
    %v318 = vadd.f32 0.0, %v317
    %v319 = vpop.f32.mrf.mxu0
    %v320 = vadd.f32 0.0, %v319
    %321 = vmatprep.mubr.bf16.mxu0 0
    %322 = vmatmul.mubr.bf16.gmra.mxu0 %v157
    %v323 = vpop.f32.mrf.mxu0
    %v324 = vadd.f32 0.0, %v323
    %v325 = vpop.f32.mrf.mxu0
    %v326 = vadd.f32 0.0, %v325
    %v327 = vpop.f32.mrf.mxu0
    %v328 = vadd.f32 0.0, %v327
    %v329 = vpop.f32.mrf.mxu0
    %v330 = vadd.f32 0.0, %v329
    %331 = vmatprep.mubr.bf16.mxu0 0
    %332 = vmatmul.mubr.bf16.gmra.mxu0 %v158
    %v333 = vpop.f32.mrf.mxu0
    %v334 = vadd.f32 0.0, %v333
    %v335 = vpop.f32.mrf.mxu0
    %v336 = vadd.f32 0.0, %v335
    %v337 = vpop.f32.mrf.mxu0
    %v338 = vadd.f32 0.0, %v337
    %v339 = vpop.f32.mrf.mxu0
    %v340 = vadd.f32 0.0, %v339
    %341 = vmatprep.mubr.bf16.mxu0 0
    %342 = vmatmul.mubr.bf16.gmra.mxu0 %v159
    %v343 = vpop.f32.mrf.mxu0
    %v344 = vadd.f32 0.0, %v343
    %v345 = vpop.f32.mrf.mxu0
    %v346 = vadd.f32 0.0, %v345
    %v347 = vpop.f32.mrf.mxu0
    %v348 = vadd.f32 0.0, %v347
    %v349 = vpop.f32.mrf.mxu0
    %v350 = vadd.f32 0.0, %v349
    %351 = vmatprep.mubr.bf16.mxu0 0
    %352 = vmatmul.mubr.bf16.gmra.mxu0 %v160
    %v353 = vpop.f32.mrf.mxu0
    %v354 = vadd.f32 0.0, %v353
    %v355 = vpop.f32.mrf.mxu0
    %v356 = vadd.f32 0.0, %v355
    %v357 = vpop.f32.mrf.mxu0
    %v358 = vadd.f32 0.0, %v357
    %v359 = vpop.f32.mrf.mxu0
    %v360 = vadd.f32 0.0, %v359
    %361 = vdwg.mxu0
    %v362 = vld [vmem:[%s2] sm:$0x3]
    %v363 = vld [vmem:[%s3] sm:$0x3]
    %364 = vmatprep.subr.mxu0 %v360
    %365 = vmatpush1.msra.mxu0 %v358
    %366 = vmatprep.subr.mxu0 %v356
    %367 = vmatpush1.msra.mxu0 %v354
    %368 = vmatprep.subr.mxu0 %v350
    %369 = vmatpush1.msra.mxu0 %v348
    %370 = vmatprep.subr.mxu0 %v346
    %371 = vmatpush1.msra.mxu0 %v344
    %372 = vmatprep.subr.mxu0 %v340
    %373 = vmatpush1.msra.mxu0 %v338
    %374 = vmatprep.subr.mxu0 %v336
    %375 = vmatpush1.msra.mxu0 %v334
    %376 = vmatprep.subr.mxu0 %v330
    %377 = vmatpush1.msra.mxu0 %v328
    %378 = vmatprep.subr.mxu0 %v326
    %379 = vmatpush1.msra.mxu0 %v324
    %380 = vmatprep.subr.mxu0 %v320
    %381 = vmatpush1.msra.mxu0 %v318
    %382 = vmatprep.subr.mxu0 %v316
    %383 = vmatpush1.msra.mxu0 %v314
    %384 = vmatprep.subr.mxu0 %v310
    %385 = vmatpush1.msra.mxu0 %v308
    %386 = vmatprep.subr.mxu0 %v306
    %387 = vmatpush1.msra.mxu0 %v304
    %388 = vmatprep.subr.mxu0 %v300
    %389 = vmatpush1.msra.mxu0 %v298
    %390 = vmatprep.subr.mxu0 %v296
    %391 = vmatpush1.msra.mxu0 %v294
    %392 = vmatprep.subr.mxu0 %v290
    %393 = vmatpush1.msra.mxu0 %v288
    %394 = vmatprep.subr.mxu0 %v286
    %395 = vmatpush1.msra.mxu0 %v284
    %396 = vmatprep.subr.mxu0 0.0
    %397 = vmatpush2.msra.mxu0 0.0
    %398 = vmatprep.subr.mxu0 0.0
    %399 = vmatpush2.msra.mxu0 0.0
    %400 = vmatprep.subr.mxu0 0.0
    %401 = vmatpush2.msra.mxu0 0.0
    %402 = vmatprep.subr.mxu0 0.0
    %403 = vmatpush2.msra.mxu0 0.0
    %404 = vmatprep.subr.mxu0 0.0
    %405 = vmatpush2.msra.mxu0 0.0
    %406 = vmatprep.subr.mxu0 0.0
    %407 = vmatpush2.msra.mxu0 0.0
    %408 = vmatprep.subr.mxu0 0.0
    %409 = vmatpush2.msra.mxu0 0.0
    %410 = vmatprep.subr.mxu0 0.0
    %411 = vmatpush2.msra.mxu0 0.0
    %412 = vmatprep.subr.mxu0 0.0
    %413 = vmatpush2.msra.mxu0 0.0
    %414 = vmatprep.subr.mxu0 0.0
    %415 = vmatpush2.msra.mxu0 0.0
    %416 = vmatprep.subr.mxu0 0.0
    %417 = vmatpush2.msra.mxu0 0.0
    %418 = vmatprep.subr.mxu0 0.0
    %419 = vmatpush2.msra.mxu0 0.0
    %420 = vmatprep.subr.mxu0 0.0
    %421 = vmatpush2.msra.mxu0 0.0
    %422 = vmatprep.subr.mxu0 0.0
    %423 = vmatpush2.msra.mxu0 0.0
    %424 = vmatprep.subr.mxu0 0.0
    %425 = vmatpush2.msra.mxu0 0.0
    %426 = vmatprep.subr.mxu0 0.0
    %427 = vmatpush2.msra.mxu0 0.0
    %428 = vmatprep.mubr.f32.mxu0 0.0
    %429 = vmatmul.mubr.f32.gmra.mxu0 1.0
    %v430 = vpop.f32.mrf.mxu0
    %v431 = vadd.f32 0.0, %v430
    %v432 = vpop.f32.mrf.mxu0
    %v433 = vadd.f32 0.0, %v432
    %434 = vdwg.mxu0
    %v435 = vmul.f32 %v284, %v284
    %v436 = vmul.f32 %v286, %v286
    %v437 = vmul.f32 %v288, %v288
    %v438 = vmul.f32 %v290, %v290
    %v439 = vmul.f32 %v294, %v294
    %v440 = vmul.f32 %v296, %v296
    %v441 = vmul.f32 %v298, %v298
    %v442 = vmul.f32 %v300, %v300
    %v443 = vmul.f32 %v304, %v304
    %v444 = vmul.f32 %v306, %v306
    %v445 = vmul.f32 %v308, %v308
    %v446 = vmul.f32 %v310, %v310
    %v447 = vmul.f32 %v314, %v314
    %v448 = vmul.f32 %v316, %v316
    %v449 = vmul.f32 %v318, %v318
    %v450 = vmul.f32 %v320, %v320
    %v451 = vmul.f32 %v324, %v324
    %v452 = vmul.f32 %v326, %v326
    %v453 = vmul.f32 %v328, %v328
    %v454 = vmul.f32 %v330, %v330
    %v455 = vmul.f32 %v334, %v334
    %v456 = vmul.f32 %v336, %v336
    %v457 = vmul.f32 %v338, %v338
    %v458 = vmul.f32 %v340, %v340
    %v459 = vmul.f32 %v344, %v344
    %v460 = vmul.f32 %v346, %v346
    %v461 = vmul.f32 %v348, %v348
    %v462 = vmul.f32 %v350, %v350
    %v463 = vmul.f32 %v354, %v354
    %v464 = vmul.f32 %v356, %v356
    %v465 = vmul.f32 %v358, %v358
    %v466 = vmul.f32 %v360, %v360
    %467 = vmatprep.subr.mxu0 %v466
    %468 = vmatpush1.msra.mxu0 %v465
    %469 = vmatprep.subr.mxu0 %v464
    %470 = vmatpush1.msra.mxu0 %v463
    %471 = vmatprep.subr.mxu0 %v462
    %472 = vmatpush1.msra.mxu0 %v461
    %473 = vmatprep.subr.mxu0 %v460
    %474 = vmatpush1.msra.mxu0 %v459
    %475 = vmatprep.subr.mxu0 %v458
    %476 = vmatpush1.msra.mxu0 %v457
    %477 = vmatprep.subr.mxu0 %v456
    %478 = vmatpush1.msra.mxu0 %v455
    %479 = vmatprep.subr.mxu0 %v454
    %480 = vmatpush1.msra.mxu0 %v453
    %481 = vmatprep.subr.mxu0 %v452
    %482 = vmatpush1.msra.mxu0 %v451
    %483 = vmatprep.subr.mxu0 %v450
    %484 = vmatpush1.msra.mxu0 %v449
    %485 = vmatprep.subr.mxu0 %v448
    %486 = vmatpush1.msra.mxu0 %v447
    %487 = vmatprep.subr.mxu0 %v446
    %488 = vmatpush1.msra.mxu0 %v445
    %489 = vmatprep.subr.mxu0 %v444
    %490 = vmatpush1.msra.mxu0 %v443
    %491 = vmatprep.subr.mxu0 %v442
    %492 = vmatpush1.msra.mxu0 %v441
    %493 = vmatprep.subr.mxu0 %v440
    %494 = vmatpush1.msra.mxu0 %v439
    %495 = vmatprep.subr.mxu0 %v438
    %496 = vmatpush1.msra.mxu0 %v437
    %497 = vmatprep.subr.mxu0 %v436
    %498 = vmatpush1.msra.mxu0 %v435
    %499 = vmatprep.subr.mxu0 0.0
    %500 = vmatpush2.msra.mxu0 0.0
    %501 = vmatprep.subr.mxu0 0.0
    %502 = vmatpush2.msra.mxu0 0.0
    %503 = vmatprep.subr.mxu0 0.0
    %504 = vmatpush2.msra.mxu0 0.0
    %505 = vmatprep.subr.mxu0 0.0
    %506 = vmatpush2.msra.mxu0 0.0
    %507 = vmatprep.subr.mxu0 0.0
    %508 = vmatpush2.msra.mxu0 0.0
    %509 = vmatprep.subr.mxu0 0.0
    %510 = vmatpush2.msra.mxu0 0.0
    %511 = vmatprep.subr.mxu0 0.0
    %512 = vmatpush2.msra.mxu0 0.0
    %513 = vmatprep.subr.mxu0 0.0
    %514 = vmatpush2.msra.mxu0 0.0
    %515 = vmatprep.subr.mxu0 0.0
    %516 = vmatpush2.msra.mxu0 0.0
    %517 = vmatprep.subr.mxu0 0.0
    %518 = vmatpush2.msra.mxu0 0.0
    %519 = vmatprep.subr.mxu0 0.0
    %520 = vmatpush2.msra.mxu0 0.0
    %521 = vmatprep.subr.mxu0 0.0
    %522 = vmatpush2.msra.mxu0 0.0
    %523 = vmatprep.subr.mxu0 0.0
    %524 = vmatpush2.msra.mxu0 0.0
    %525 = vmatprep.subr.mxu0 0.0
    %526 = vmatpush2.msra.mxu0 0.0
    %527 = vmatprep.subr.mxu0 0.0
    %528 = vmatpush2.msra.mxu0 0.0
    %529 = vmatprep.subr.mxu0 0.0
    %530 = vmatpush2.msra.mxu0 0.0
    %531 = vmatprep.mubr.f32.mxu0 0.0
    %532 = vmatmul.mubr.f32.gmra.mxu0 1.0
    %v533 = vpop.f32.mrf.mxu0
    %v534 = vadd.f32 0.0, %v533
    %v535 = vpop.f32.mrf.mxu0
    %v536 = vadd.f32 0.0, %v535
    %537 = vdwg.mxu0
    %v538 = vmul.f32 %v431, 0.0078125
    %v539 = vmul.f32 %v433, 0.0078125
    %v540 = vmul.f32 %v534, 0.0078125
    %v541 = vmul.f32 %v536, 0.0078125
    %v542 = vmul.f32 %v538, %v538
    %v543 = vmul.f32 %v539, %v539
    %v544 = vsub.f32 %v540, %v542
    %v545 = vsub.f32 %v541, %v543
    %v546 = vmax.f32 %v544, 0.0
    %v547 = vmax.f32 %v545, 0.0
    %v548 = vadd.f32 %v546, 1e-05
    %v549 = vadd.f32 %v547, 1e-05
    %v550 = vrsqrt.pop %v548
    %v551 = vrsqrt.pop %v549
    %v554 = vcombine.low %v550, %v551
    %v556 = vunpack.c.l.s4 1966171168
    %v557 = vunpack.c.0.s8 %v556
    %v558 = vlaneseq
    %v559 = vshrl.u32 %v558, 7
    %v560 = vsub.s32 %v557, %v559
    %v561 = vrot.slane %v554, %v560
    %v563 = vunpack.c.l.s4 1966171168
    %v564 = vunpack.c.0.s8 %v563
    %v565 = vlaneseq
    %v566 = vshrl.u32 %v565, 7
    %v567 = vsub.s32 %v564, %v566
    %v568 = vrot.slane %v561, %v567
    %v570 = vmul.f32 %v362, %v568
    %v572 = vlaneseq
    %v573 = vshrl.u32 %v572, 7
    %v574 = vsub.s32 0, %v573
    %v575 = vrot.slane %v570, %v574
    %v576 = vlaneseq
    %v577 = vshrl.u32 %v576, 7
    %v578 = vsub.s32 1, %v577
    %v579 = vrot.slane %v570, %v578
    %v582 = vmul.f32 %v538, %v575
    %v583 = vmul.f32 %v539, %v579
    %v586 = vcombine.low %v582, %v583
    %v588 = vunpack.c.l.s4 1966171168
    %v589 = vunpack.c.0.s8 %v588
    %v590 = vlaneseq
    %v591 = vshrl.u32 %v590, 7
    %v592 = vsub.s32 %v589, %v591
    %v593 = vrot.slane %v586, %v592
    %v595 = vunpack.c.l.s4 1966171168
    %v596 = vunpack.c.0.s8 %v595
    %v597 = vlaneseq
    %v598 = vshrl.u32 %v597, 7
    %v599 = vsub.s32 %v596, %v598
    %v600 = vrot.slane %v593, %v599
    %v602 = vsub.f32 %v363, %v600
    %v603 = vmul.f32 %v284, %v575
    %v604 = vmul.f32 %v286, %v579
    %v605 = vmul.f32 %v288, %v575
    %v606 = vmul.f32 %v290, %v579
    %v607 = vmul.f32 %v294, %v575
    %v608 = vmul.f32 %v296, %v579
    %v609 = vmul.f32 %v298, %v575
    %v610 = vmul.f32 %v300, %v579
    %v611 = vmul.f32 %v304, %v575
    %v612 = vmul.f32 %v306, %v579
    %v613 = vmul.f32 %v308, %v575
    %v614 = vmul.f32 %v310, %v579
    %v615 = vmul.f32 %v314, %v575
    %v616 = vmul.f32 %v316, %v579
    %v617 = vmul.f32 %v318, %v575
    %v618 = vmul.f32 %v320, %v579
    %v619 = vmul.f32 %v324, %v575
    %v620 = vmul.f32 %v326, %v579
    %v621 = vmul.f32 %v328, %v575
    %v622 = vmul.f32 %v330, %v579
    %v623 = vmul.f32 %v334, %v575
    %v624 = vmul.f32 %v336, %v579
    %v625 = vmul.f32 %v338, %v575
    %v626 = vmul.f32 %v340, %v579
    %v627 = vmul.f32 %v344, %v575
    %v628 = vmul.f32 %v346, %v579
    %v629 = vmul.f32 %v348, %v575
    %v630 = vmul.f32 %v350, %v579
    %v631 = vmul.f32 %v354, %v575
    %v632 = vmul.f32 %v356, %v579
    %v633 = vmul.f32 %v358, %v575
    %v634 = vmul.f32 %v360, %v579
    %v636 = vlaneseq
    %v637 = vshrl.u32 %v636, 7
    %v638 = vsub.s32 0, %v637
    %v639 = vrot.slane %v602, %v638
    %v640 = vlaneseq
    %v641 = vshrl.u32 %v640, 7
    %v642 = vsub.s32 1, %v641
    %v643 = vrot.slane %v602, %v642
    %v646 = vadd.f32 %v603, %v639
    %v647 = vadd.f32 %v604, %v643
    %v648 = vadd.f32 %v605, %v639
    %v649 = vadd.f32 %v606, %v643
    %v650 = vadd.f32 %v607, %v639
    %v651 = vadd.f32 %v608, %v643
    %v652 = vadd.f32 %v609, %v639
    %v653 = vadd.f32 %v610, %v643
    %v654 = vadd.f32 %v611, %v639
    %v655 = vadd.f32 %v612, %v643
    %v656 = vadd.f32 %v613, %v639
    %v657 = vadd.f32 %v614, %v643
    %v658 = vadd.f32 %v615, %v639
    %v659 = vadd.f32 %v616, %v643
    %v660 = vadd.f32 %v617, %v639
    %v661 = vadd.f32 %v618, %v643
    %v662 = vadd.f32 %v619, %v639
    %v663 = vadd.f32 %v620, %v643
    %v664 = vadd.f32 %v621, %v639
    %v665 = vadd.f32 %v622, %v643
    %v666 = vadd.f32 %v623, %v639
    %v667 = vadd.f32 %v624, %v643
    %v668 = vadd.f32 %v625, %v639
    %v669 = vadd.f32 %v626, %v643
    %v670 = vadd.f32 %v627, %v639
    %v671 = vadd.f32 %v628, %v643
    %v672 = vadd.f32 %v629, %v639
    %v673 = vadd.f32 %v630, %v643
    %v674 = vadd.f32 %v631, %v639
    %v675 = vadd.f32 %v632, %v643
    %v676 = vadd.f32 %v633, %v639
    %v677 = vadd.f32 %v634, %v643
    %v678 = vmax.f32 %v646, 0.0
    %v679 = vmax.f32 %v647, 0.0
    %v680 = vmax.f32 %v648, 0.0
    %v681 = vmax.f32 %v649, 0.0
    %v682 = vmax.f32 %v650, 0.0
    %v683 = vmax.f32 %v651, 0.0
    %v684 = vmax.f32 %v652, 0.0
    %v685 = vmax.f32 %v653, 0.0
    %v686 = vmax.f32 %v654, 0.0
    %v687 = vmax.f32 %v655, 0.0
    %v688 = vmax.f32 %v656, 0.0
    %v689 = vmax.f32 %v657, 0.0
    %v690 = vmax.f32 %v658, 0.0
    %v691 = vmax.f32 %v659, 0.0
    %v692 = vmax.f32 %v660, 0.0
    %v693 = vmax.f32 %v661, 0.0
    %v694 = vmax.f32 %v662, 0.0
    %v695 = vmax.f32 %v663, 0.0
    %v696 = vmax.f32 %v664, 0.0
    %v697 = vmax.f32 %v665, 0.0
    %v698 = vmax.f32 %v666, 0.0
    %v699 = vmax.f32 %v667, 0.0
    %v700 = vmax.f32 %v668, 0.0
    %v701 = vmax.f32 %v669, 0.0
    %v702 = vmax.f32 %v670, 0.0
    %v703 = vmax.f32 %v671, 0.0
    %v704 = vmax.f32 %v672, 0.0
    %v705 = vmax.f32 %v673, 0.0
    %v706 = vmax.f32 %v674, 0.0
    %v707 = vmax.f32 %v675, 0.0
    %v708 = vmax.f32 %v676, 0.0
    %v709 = vmax.f32 %v677, 0.0
    %v710 = vpack.c.bf16 %v680, %v678
    %v711 = vpack.c.bf16 %v681, %v679
    %v712 = vpack.c.bf16 %v684, %v682
    %v713 = vpack.c.bf16 %v685, %v683
    %v714 = vpack.c.bf16 %v688, %v686
    %v715 = vpack.c.bf16 %v689, %v687
    %v716 = vpack.c.bf16 %v692, %v690
    %v717 = vpack.c.bf16 %v693, %v691
    %v718 = vpack.c.bf16 %v696, %v694
    %v719 = vpack.c.bf16 %v697, %v695
    %v720 = vpack.c.bf16 %v700, %v698
    %v721 = vpack.c.bf16 %v701, %v699
    %v722 = vpack.c.bf16 %v704, %v702
    %v723 = vpack.c.bf16 %v705, %v703
    %v724 = vpack.c.bf16 %v708, %v706
    %v725 = vpack.c.bf16 %v709, %v707
    %v726 = vld [vmem:[#allocation7] sm:$0xff]
    %v727 = vld [vmem:[#allocation7 + $0x8] sm:$0xff]
    %v728 = vld [vmem:[#allocation7 + $0x10] sm:$0xff]
    %v729 = vld [vmem:[#allocation7 + $0x18] sm:$0xff]
    %v730 = vld [vmem:[#allocation7 + $0x20] sm:$0xff]
    %v731 = vld [vmem:[#allocation7 + $0x28] sm:$0xff]
    %v732 = vld [vmem:[#allocation7 + $0x30] sm:$0xff]
    %v733 = vld [vmem:[#allocation7 + $0x38] sm:$0xff]
    %v734 = vld [vmem:[#allocation7 + $0x40] sm:$0xff]
    %v735 = vld [vmem:[#allocation7 + $0x48] sm:$0xff]
    %v736 = vld [vmem:[#allocation7 + $0x50] sm:$0xff]
    %v737 = vld [vmem:[#allocation7 + $0x58] sm:$0xff]
    %v738 = vld [vmem:[#allocation7 + $0x60] sm:$0xff]
    %v739 = vld [vmem:[#allocation7 + $0x68] sm:$0xff]
    %v740 = vld [vmem:[#allocation7 + $0x70] sm:$0xff]
    %v741 = vld [vmem:[#allocation7 + $0x78] sm:$0xff]
    %v742 = vld [vmem:[#allocation7 + $0x80] sm:$0xff]
    %v743 = vld [vmem:[#allocation7 + $0x88] sm:$0xff]
    %v744 = vld [vmem:[#allocation7 + $0x90] sm:$0xff]
    %v745 = vld [vmem:[#allocation7 + $0x98] sm:$0xff]
    %v746 = vld [vmem:[#allocation7 + $0xa0] sm:$0xff]
    %v747 = vld [vmem:[#allocation7 + $0xa8] sm:$0xff]
    %v748 = vld [vmem:[#allocation7 + $0xb0] sm:$0xff]
    %v749 = vld [vmem:[#allocation7 + $0xb8] sm:$0xff]
    %v750 = vld [vmem:[#allocation7 + $0xc0] sm:$0xff]
    %v751 = vld [vmem:[#allocation7 + $0xc8] sm:$0xff]
    %v752 = vld [vmem:[#allocation7 + $0xd0] sm:$0xff]
    %v753 = vld [vmem:[#allocation7 + $0xd8] sm:$0xff]
    %v754 = vld [vmem:[#allocation7 + $0xe0] sm:$0xff]
    %v755 = vld [vmem:[#allocation7 + $0xe8] sm:$0xff]
    %v756 = vld [vmem:[#allocation7 + $0xf0] sm:$0xff]
    %v757 = vld [vmem:[#allocation7 + $0xf8] sm:$0xff]
    %v790 = vunpack.c.l.b16 %v726
    %v791 = vunpack.c.h.b16 %v726
    %v792 = vunpack.c.l.b16 %v727
    %v793 = vunpack.c.h.b16 %v727
    %v794 = vunpack.c.l.b16 %v728
    %v795 = vunpack.c.h.b16 %v728
    %v796 = vunpack.c.l.b16 %v729
    %v797 = vunpack.c.h.b16 %v729
    %v798 = vunpack.c.l.b16 %v730
    %v799 = vunpack.c.h.b16 %v730
    %v800 = vunpack.c.l.b16 %v731
    %v801 = vunpack.c.h.b16 %v731
    %v802 = vunpack.c.l.b16 %v732
    %v803 = vunpack.c.h.b16 %v732
    %v804 = vunpack.c.l.b16 %v733
    %v805 = vunpack.c.h.b16 %v733
    %v806 = vunpack.c.l.b16 %v734
    %v807 = vunpack.c.h.b16 %v734
    %v808 = vunpack.c.l.b16 %v735
    %v809 = vunpack.c.h.b16 %v735
    %v810 = vunpack.c.l.b16 %v736
    %v811 = vunpack.c.h.b16 %v736
    %v812 = vunpack.c.l.b16 %v737
    %v813 = vunpack.c.h.b16 %v737
    %v814 = vunpack.c.l.b16 %v738
    %v815 = vunpack.c.h.b16 %v738
    %v816 = vunpack.c.l.b16 %v739
    %v817 = vunpack.c.h.b16 %v739
    %v818 = vunpack.c.l.b16 %v740
    %v819 = vunpack.c.h.b16 %v740
    %v820 = vunpack.c.l.b16 %v741
    %v821 = vunpack.c.h.b16 %v741
    %v822 = vunpack.c.l.b16 %v742
    %v823 = vunpack.c.h.b16 %v742
    %v824 = vunpack.c.l.b16 %v743
    %v825 = vunpack.c.h.b16 %v743
    %v826 = vunpack.c.l.b16 %v744
    %v827 = vunpack.c.h.b16 %v744
    %v828 = vunpack.c.l.b16 %v745
    %v829 = vunpack.c.h.b16 %v745
    %v830 = vunpack.c.l.b16 %v746
    %v831 = vunpack.c.h.b16 %v746
    %v832 = vunpack.c.l.b16 %v747
    %v833 = vunpack.c.h.b16 %v747
    %v834 = vunpack.c.l.b16 %v748
    %v835 = vunpack.c.h.b16 %v748
    %v836 = vunpack.c.l.b16 %v749
    %v837 = vunpack.c.h.b16 %v749
    %v838 = vunpack.c.l.b16 %v750
    %v839 = vunpack.c.h.b16 %v750
    %v840 = vunpack.c.l.b16 %v751
    %v841 = vunpack.c.h.b16 %v751
    %v842 = vunpack.c.l.b16 %v752
    %v843 = vunpack.c.h.b16 %v752
    %v844 = vunpack.c.l.b16 %v753
    %v845 = vunpack.c.h.b16 %v753
    %v846 = vunpack.c.l.b16 %v754
    %v847 = vunpack.c.h.b16 %v754
    %v848 = vunpack.c.l.b16 %v755
    %v849 = vunpack.c.h.b16 %v755
    %v850 = vunpack.c.l.b16 %v756
    %v851 = vunpack.c.h.b16 %v756
    %v852 = vunpack.c.l.b16 %v757
    %v853 = vunpack.c.h.b16 %v757
    %v854 = vpack.c.b16 %v792, %v790
    %v855 = vpack.c.b16 %v793, %v791
    %v856 = vpack.c.b16 %v796, %v794
    %v857 = vpack.c.b16 %v797, %v795
    %v858 = vpack.c.b16 %v800, %v798
    %v859 = vpack.c.b16 %v801, %v799
    %v860 = vpack.c.b16 %v804, %v802
    %v861 = vpack.c.b16 %v805, %v803
    %v862 = vpack.c.b16 %v808, %v806
    %v863 = vpack.c.b16 %v809, %v807
    %v864 = vpack.c.b16 %v812, %v810
    %v865 = vpack.c.b16 %v813, %v811
    %v866 = vpack.c.b16 %v816, %v814
    %v867 = vpack.c.b16 %v817, %v815
    %v868 = vpack.c.b16 %v820, %v818
    %v869 = vpack.c.b16 %v821, %v819
    %v870 = vpack.c.b16 %v824, %v822
    %v871 = vpack.c.b16 %v825, %v823
    %v872 = vpack.c.b16 %v828, %v826
    %v873 = vpack.c.b16 %v829, %v827
    %v874 = vpack.c.b16 %v832, %v830
    %v875 = vpack.c.b16 %v833, %v831
    %v876 = vpack.c.b16 %v836, %v834
    %v877 = vpack.c.b16 %v837, %v835
    %v878 = vpack.c.b16 %v840, %v838
    %v879 = vpack.c.b16 %v841, %v839
    %v880 = vpack.c.b16 %v844, %v842
    %v881 = vpack.c.b16 %v845, %v843
    %v882 = vpack.c.b16 %v848, %v846
    %v883 = vpack.c.b16 %v849, %v847
    %v884 = vpack.c.b16 %v852, %v850
    %v885 = vpack.c.b16 %v853, %v851
    %918 = vmatprep.subr.bf16.mxu0 %v869
    %919 = vmatpush1.bf16.msra.mxu0 %v868
    %920 = vmatprep.subr.bf16.mxu0 %v867
    %921 = vmatpush1.bf16.msra.mxu0 %v866
    %922 = vmatprep.subr.bf16.mxu0 %v865
    %923 = vmatpush1.bf16.msra.mxu0 %v864
    %924 = vmatprep.subr.bf16.mxu0 %v863
    %925 = vmatpush1.bf16.msra.mxu0 %v862
    %926 = vmatprep.subr.bf16.mxu0 %v861
    %927 = vmatpush1.bf16.msra.mxu0 %v860
    %928 = vmatprep.subr.bf16.mxu0 %v859
    %929 = vmatpush1.bf16.msra.mxu0 %v858
    %930 = vmatprep.subr.bf16.mxu0 %v857
    %931 = vmatpush1.bf16.msra.mxu0 %v856
    %932 = vmatprep.subr.bf16.mxu0 %v855
    %933 = vmatpush1.bf16.msra.mxu0 %v854
    %934 = vmatprep.subr.bf16.mxu0 %v885
    %935 = vmatpush2.bf16.msra.mxu0 %v884
    %936 = vmatprep.subr.bf16.mxu0 %v883
    %937 = vmatpush2.bf16.msra.mxu0 %v882
    %938 = vmatprep.subr.bf16.mxu0 %v881
    %939 = vmatpush2.bf16.msra.mxu0 %v880
    %940 = vmatprep.subr.bf16.mxu0 %v879
    %941 = vmatpush2.bf16.msra.mxu0 %v878
    %942 = vmatprep.subr.bf16.mxu0 %v877
    %943 = vmatpush2.bf16.msra.mxu0 %v876
    %944 = vmatprep.subr.bf16.mxu0 %v875
    %945 = vmatpush2.bf16.msra.mxu0 %v874
    %946 = vmatprep.subr.bf16.mxu0 %v873
    %947 = vmatpush2.bf16.msra.mxu0 %v872
    %948 = vmatprep.subr.bf16.mxu0 %v871
    %949 = vmatpush2.bf16.msra.mxu0 %v870
    %950 = vmatprep.mubr.bf16.mxu0 %v711
    %951 = vmatmul.mubr.bf16.gmra.mxu0 %v710
    %v952 = vpop.f32.mrf.mxu0
    %v953 = vadd.f32 0.0, %v952
    %v954 = vpop.f32.mrf.mxu0
    %v955 = vadd.f32 0.0, %v954
    %v956 = vpop.f32.mrf.mxu0
    %v957 = vadd.f32 0.0, %v956
    %v958 = vpop.f32.mrf.mxu0
    %v959 = vadd.f32 0.0, %v958
    %960 = vmatprep.mubr.bf16.mxu0 %v713
    %961 = vmatmul.mubr.bf16.gmra.mxu0 %v712
    %v962 = vpop.f32.mrf.mxu0
    %v963 = vadd.f32 0.0, %v962
    %v964 = vpop.f32.mrf.mxu0
    %v965 = vadd.f32 0.0, %v964
    %v966 = vpop.f32.mrf.mxu0
    %v967 = vadd.f32 0.0, %v966
    %v968 = vpop.f32.mrf.mxu0
    %v969 = vadd.f32 0.0, %v968
    %970 = vmatprep.mubr.bf16.mxu0 %v715
    %971 = vmatmul.mubr.bf16.gmra.mxu0 %v714
    %v972 = vpop.f32.mrf.mxu0
    %v973 = vadd.f32 0.0, %v972
    %v974 = vpop.f32.mrf.mxu0
    %v975 = vadd.f32 0.0, %v974
    %v976 = vpop.f32.mrf.mxu0
    %v977 = vadd.f32 0.0, %v976
    %v978 = vpop.f32.mrf.mxu0
    %v979 = vadd.f32 0.0, %v978
    %980 = vmatprep.mubr.bf16.mxu0 %v717
    %981 = vmatmul.mubr.bf16.gmra.mxu0 %v716
    %v982 = vpop.f32.mrf.mxu0
    %v983 = vadd.f32 0.0, %v982
    %v984 = vpop.f32.mrf.mxu0
    %v985 = vadd.f32 0.0, %v984
    %v986 = vpop.f32.mrf.mxu0
    %v987 = vadd.f32 0.0, %v986
    %v988 = vpop.f32.mrf.mxu0
    %v989 = vadd.f32 0.0, %v988
    %990 = vmatprep.mubr.bf16.mxu0 %v719
    %991 = vmatmul.mubr.bf16.gmra.mxu0 %v718
    %v992 = vpop.f32.mrf.mxu0
    %v993 = vadd.f32 0.0, %v992
    %v994 = vpop.f32.mrf.mxu0
    %v995 = vadd.f32 0.0, %v994
    %v996 = vpop.f32.mrf.mxu0
    %v997 = vadd.f32 0.0, %v996
    %v998 = vpop.f32.mrf.mxu0
    %v999 = vadd.f32 0.0, %v998
    %1000 = vmatprep.mubr.bf16.mxu0 %v721
    %1001 = vmatmul.mubr.bf16.gmra.mxu0 %v720
    %v1002 = vpop.f32.mrf.mxu0
    %v1003 = vadd.f32 0.0, %v1002
    %v1004 = vpop.f32.mrf.mxu0
    %v1005 = vadd.f32 0.0, %v1004
    %v1006 = vpop.f32.mrf.mxu0
    %v1007 = vadd.f32 0.0, %v1006
    %v1008 = vpop.f32.mrf.mxu0
    %v1009 = vadd.f32 0.0, %v1008
    %1010 = vmatprep.mubr.bf16.mxu0 %v723
    %1011 = vmatmul.mubr.bf16.gmra.mxu0 %v722
    %v1012 = vpop.f32.mrf.mxu0
    %v1013 = vadd.f32 0.0, %v1012
    %v1014 = vpop.f32.mrf.mxu0
    %v1015 = vadd.f32 0.0, %v1014
    %v1016 = vpop.f32.mrf.mxu0
    %v1017 = vadd.f32 0.0, %v1016
    %v1018 = vpop.f32.mrf.mxu0
    %v1019 = vadd.f32 0.0, %v1018
    %1020 = vmatprep.mubr.bf16.mxu0 %v725
    %1021 = vmatmul.mubr.bf16.gmra.mxu0 %v724
    %v1022 = vpop.f32.mrf.mxu0
    %v1023 = vadd.f32 0.0, %v1022
    %v1024 = vpop.f32.mrf.mxu0
    %v1025 = vadd.f32 0.0, %v1024
    %v1026 = vpop.f32.mrf.mxu0
    %v1027 = vadd.f32 0.0, %v1026
    %v1028 = vpop.f32.mrf.mxu0
    %v1029 = vadd.f32 0.0, %v1028
    %1030 = vdwg.mxu0
    %v1031 = vld [vmem:[%s5] sm:$0x3]
    %v1032 = vld [vmem:[%s6] sm:$0x3]
    %1033 = vmatprep.subr.mxu0 %v1029
    %1034 = vmatpush1.msra.mxu0 %v1027
    %1035 = vmatprep.subr.mxu0 %v1025
    %1036 = vmatpush1.msra.mxu0 %v1023
    %1037 = vmatprep.subr.mxu0 %v1019
    %1038 = vmatpush1.msra.mxu0 %v1017
    %1039 = vmatprep.subr.mxu0 %v1015
    %1040 = vmatpush1.msra.mxu0 %v1013
    %1041 = vmatprep.subr.mxu0 %v1009
    %1042 = vmatpush1.msra.mxu0 %v1007
    %1043 = vmatprep.subr.mxu0 %v1005
    %1044 = vmatpush1.msra.mxu0 %v1003
    %1045 = vmatprep.subr.mxu0 %v999
    %1046 = vmatpush1.msra.mxu0 %v997
    %1047 = vmatprep.subr.mxu0 %v995
    %1048 = vmatpush1.msra.mxu0 %v993
    %1049 = vmatprep.subr.mxu0 %v989
    %1050 = vmatpush1.msra.mxu0 %v987
    %1051 = vmatprep.subr.mxu0 %v985
    %1052 = vmatpush1.msra.mxu0 %v983
    %1053 = vmatprep.subr.mxu0 %v979
    %1054 = vmatpush1.msra.mxu0 %v977
    %1055 = vmatprep.subr.mxu0 %v975
    %1056 = vmatpush1.msra.mxu0 %v973
    %1057 = vmatprep.subr.mxu0 %v969
    %1058 = vmatpush1.msra.mxu0 %v967
    %1059 = vmatprep.subr.mxu0 %v965
    %1060 = vmatpush1.msra.mxu0 %v963
    %1061 = vmatprep.subr.mxu0 %v959
    %1062 = vmatpush1.msra.mxu0 %v957
    %1063 = vmatprep.subr.mxu0 %v955
    %1064 = vmatpush1.msra.mxu0 %v953
    %1065 = vmatprep.subr.mxu0 0.0
    %1066 = vmatpush2.msra.mxu0 0.0
    %1067 = vmatprep.subr.mxu0 0.0
    %1068 = vmatpush2.msra.mxu0 0.0
    %1069 = vmatprep.subr.mxu0 0.0
    %1070 = vmatpush2.msra.mxu0 0.0
    %1071 = vmatprep.subr.mxu0 0.0
    %1072 = vmatpush2.msra.mxu0 0.0
    %1073 = vmatprep.subr.mxu0 0.0
    %1074 = vmatpush2.msra.mxu0 0.0
    %1075 = vmatprep.subr.mxu0 0.0
    %1076 = vmatpush2.msra.mxu0 0.0
    %1077 = vmatprep.subr.mxu0 0.0
    %1078 = vmatpush2.msra.mxu0 0.0
    %1079 = vmatprep.subr.mxu0 0.0
    %1080 = vmatpush2.msra.mxu0 0.0
    %1081 = vmatprep.subr.mxu0 0.0
    %1082 = vmatpush2.msra.mxu0 0.0
    %1083 = vmatprep.subr.mxu0 0.0
    %1084 = vmatpush2.msra.mxu0 0.0
    %1085 = vmatprep.subr.mxu0 0.0
    %1086 = vmatpush2.msra.mxu0 0.0
    %1087 = vmatprep.subr.mxu0 0.0
    %1088 = vmatpush2.msra.mxu0 0.0
    %1089 = vmatprep.subr.mxu0 0.0
    %1090 = vmatpush2.msra.mxu0 0.0
    %1091 = vmatprep.subr.mxu0 0.0
    %1092 = vmatpush2.msra.mxu0 0.0
    %1093 = vmatprep.subr.mxu0 0.0
    %1094 = vmatpush2.msra.mxu0 0.0
    %1095 = vmatprep.subr.mxu0 0.0
    %1096 = vmatpush2.msra.mxu0 0.0
    %1097 = vmatprep.mubr.f32.mxu0 0.0
    %1098 = vmatmul.mubr.f32.gmra.mxu0 1.0
    %v1099 = vpop.f32.mrf.mxu0
    %v1100 = vadd.f32 0.0, %v1099
    %v1101 = vpop.f32.mrf.mxu0
    %v1102 = vadd.f32 0.0, %v1101
    %1103 = vdwg.mxu0
    %v1104 = vmul.f32 %v953, %v953
    %v1105 = vmul.f32 %v955, %v955
    %v1106 = vmul.f32 %v957, %v957
    %v1107 = vmul.f32 %v959, %v959
    %v1108 = vmul.f32 %v963, %v963
    %v1109 = vmul.f32 %v965, %v965
    %v1110 = vmul.f32 %v967, %v967
    %v1111 = vmul.f32 %v969, %v969
    %v1112 = vmul.f32 %v973, %v973
    %v1113 = vmul.f32 %v975, %v975
    %v1114 = vmul.f32 %v977, %v977
    %v1115 = vmul.f32 %v979, %v979
    %v1116 = vmul.f32 %v983, %v983
    %v1117 = vmul.f32 %v985, %v985
    %v1118 = vmul.f32 %v987, %v987
    %v1119 = vmul.f32 %v989, %v989
    %v1120 = vmul.f32 %v993, %v993
    %v1121 = vmul.f32 %v995, %v995
    %v1122 = vmul.f32 %v997, %v997
    %v1123 = vmul.f32 %v999, %v999
    %v1124 = vmul.f32 %v1003, %v1003
    %v1125 = vmul.f32 %v1005, %v1005
    %v1126 = vmul.f32 %v1007, %v1007
    %v1127 = vmul.f32 %v1009, %v1009
    %v1128 = vmul.f32 %v1013, %v1013
    %v1129 = vmul.f32 %v1015, %v1015
    %v1130 = vmul.f32 %v1017, %v1017
    %v1131 = vmul.f32 %v1019, %v1019
    %v1132 = vmul.f32 %v1023, %v1023
    %v1133 = vmul.f32 %v1025, %v1025
    %v1134 = vmul.f32 %v1027, %v1027
    %v1135 = vmul.f32 %v1029, %v1029
    %1136 = vmatprep.subr.mxu0 %v1135
    %1137 = vmatpush1.msra.mxu0 %v1134
    %1138 = vmatprep.subr.mxu0 %v1133
    %1139 = vmatpush1.msra.mxu0 %v1132
    %1140 = vmatprep.subr.mxu0 %v1131
    %1141 = vmatpush1.msra.mxu0 %v1130
    %1142 = vmatprep.subr.mxu0 %v1129
    %1143 = vmatpush1.msra.mxu0 %v1128
    %1144 = vmatprep.subr.mxu0 %v1127
    %1145 = vmatpush1.msra.mxu0 %v1126
    %1146 = vmatprep.subr.mxu0 %v1125
    %1147 = vmatpush1.msra.mxu0 %v1124
    %1148 = vmatprep.subr.mxu0 %v1123
    %1149 = vmatpush1.msra.mxu0 %v1122
    %1150 = vmatprep.subr.mxu0 %v1121
    %1151 = vmatpush1.msra.mxu0 %v1120
    %1152 = vmatprep.subr.mxu0 %v1119
    %1153 = vmatpush1.msra.mxu0 %v1118
    %1154 = vmatprep.subr.mxu0 %v1117
    %1155 = vmatpush1.msra.mxu0 %v1116
    %1156 = vmatprep.subr.mxu0 %v1115
    %1157 = vmatpush1.msra.mxu0 %v1114
    %1158 = vmatprep.subr.mxu0 %v1113
    %1159 = vmatpush1.msra.mxu0 %v1112
    %1160 = vmatprep.subr.mxu0 %v1111
    %1161 = vmatpush1.msra.mxu0 %v1110
    %1162 = vmatprep.subr.mxu0 %v1109
    %1163 = vmatpush1.msra.mxu0 %v1108
    %1164 = vmatprep.subr.mxu0 %v1107
    %1165 = vmatpush1.msra.mxu0 %v1106
    %1166 = vmatprep.subr.mxu0 %v1105
    %1167 = vmatpush1.msra.mxu0 %v1104
    %1168 = vmatprep.subr.mxu0 0.0
    %1169 = vmatpush2.msra.mxu0 0.0
    %1170 = vmatprep.subr.mxu0 0.0
    %1171 = vmatpush2.msra.mxu0 0.0
    %1172 = vmatprep.subr.mxu0 0.0
    %1173 = vmatpush2.msra.mxu0 0.0
    %1174 = vmatprep.subr.mxu0 0.0
    %1175 = vmatpush2.msra.mxu0 0.0
    %1176 = vmatprep.subr.mxu0 0.0
    %1177 = vmatpush2.msra.mxu0 0.0
    %1178 = vmatprep.subr.mxu0 0.0
    %1179 = vmatpush2.msra.mxu0 0.0
    %1180 = vmatprep.subr.mxu0 0.0
    %1181 = vmatpush2.msra.mxu0 0.0
    %1182 = vmatprep.subr.mxu0 0.0
    %1183 = vmatpush2.msra.mxu0 0.0
    %1184 = vmatprep.subr.mxu0 0.0
    %1185 = vmatpush2.msra.mxu0 0.0
    %1186 = vmatprep.subr.mxu0 0.0
    %1187 = vmatpush2.msra.mxu0 0.0
    %1188 = vmatprep.subr.mxu0 0.0
    %1189 = vmatpush2.msra.mxu0 0.0
    %1190 = vmatprep.subr.mxu0 0.0
    %1191 = vmatpush2.msra.mxu0 0.0
    %1192 = vmatprep.subr.mxu0 0.0
    %1193 = vmatpush2.msra.mxu0 0.0
    %1194 = vmatprep.subr.mxu0 0.0
    %1195 = vmatpush2.msra.mxu0 0.0
    %1196 = vmatprep.subr.mxu0 0.0
    %1197 = vmatpush2.msra.mxu0 0.0
    %1198 = vmatprep.subr.mxu0 0.0
    %1199 = vmatpush2.msra.mxu0 0.0
    %1200 = vmatprep.mubr.f32.mxu0 0.0
    %1201 = vmatmul.mubr.f32.gmra.mxu0 1.0
    %v1202 = vpop.f32.mrf.mxu0
    %v1203 = vadd.f32 0.0, %v1202
    %v1204 = vpop.f32.mrf.mxu0
    %v1205 = vadd.f32 0.0, %v1204
    %1206 = vdwg.mxu0
    %v1207 = vmul.f32 %v1100, 0.0078125
    %v1208 = vmul.f32 %v1102, 0.0078125
    %v1209 = vmul.f32 %v1203, 0.0078125
    %v1210 = vmul.f32 %v1205, 0.0078125
    %v1211 = vmul.f32 %v1207, %v1207
    %v1212 = vmul.f32 %v1208, %v1208
    %v1213 = vsub.f32 %v1209, %v1211
    %v1214 = vsub.f32 %v1210, %v1212
    %v1215 = vmax.f32 %v1213, 0.0
    %v1216 = vmax.f32 %v1214, 0.0
    %v1217 = vadd.f32 %v1215, 1e-05
    %v1218 = vadd.f32 %v1216, 1e-05
    %v1219 = vrsqrt.pop %v1217
    %v1220 = vrsqrt.pop %v1218
    %v1223 = vcombine.low %v1219, %v1220
    %v1225 = vunpack.c.l.s4 1966171168
    %v1226 = vunpack.c.0.s8 %v1225
    %v1227 = vlaneseq
    %v1228 = vshrl.u32 %v1227, 7
    %v1229 = vsub.s32 %v1226, %v1228
    %v1230 = vrot.slane %v1223, %v1229
    %v1232 = vunpack.c.l.s4 1966171168
    %v1233 = vunpack.c.0.s8 %v1232
    %v1234 = vlaneseq
    %v1235 = vshrl.u32 %v1234, 7
    %v1236 = vsub.s32 %v1233, %v1235
    %v1237 = vrot.slane %v1230, %v1236
    %v1239 = vmul.f32 %v1031, %v1237
    %v1241 = vlaneseq
    %v1242 = vshrl.u32 %v1241, 7
    %v1243 = vsub.s32 0, %v1242
    %v1244 = vrot.slane %v1239, %v1243
    %v1245 = vlaneseq
    %v1246 = vshrl.u32 %v1245, 7
    %v1247 = vsub.s32 1, %v1246
    %v1248 = vrot.slane %v1239, %v1247
    %v1251 = vmul.f32 %v1207, %v1244
    %v1252 = vmul.f32 %v1208, %v1248
    %v1255 = vcombine.low %v1251, %v1252
    %v1257 = vunpack.c.l.s4 1966171168
    %v1258 = vunpack.c.0.s8 %v1257
    %v1259 = vlaneseq
    %v1260 = vshrl.u32 %v1259, 7
    %v1261 = vsub.s32 %v1258, %v1260
    %v1262 = vrot.slane %v1255, %v1261
    %v1264 = vunpack.c.l.s4 1966171168
    %v1265 = vunpack.c.0.s8 %v1264
    %v1266 = vlaneseq
    %v1267 = vshrl.u32 %v1266, 7
    %v1268 = vsub.s32 %v1265, %v1267
    %v1269 = vrot.slane %v1262, %v1268
    %v1271 = vsub.f32 %v1032, %v1269
    %v1272 = vmul.f32 %v953, %v1244
    %v1273 = vmul.f32 %v955, %v1248
    %v1274 = vmul.f32 %v957, %v1244
    %v1275 = vmul.f32 %v959, %v1248
    %v1276 = vmul.f32 %v963, %v1244
    %v1277 = vmul.f32 %v965, %v1248
    %v1278 = vmul.f32 %v967, %v1244
    %v1279 = vmul.f32 %v969, %v1248
    %v1280 = vmul.f32 %v973, %v1244
    %v1281 = vmul.f32 %v975, %v1248
    %v1282 = vmul.f32 %v977, %v1244
    %v1283 = vmul.f32 %v979, %v1248
    %v1284 = vmul.f32 %v983, %v1244
    %v1285 = vmul.f32 %v985, %v1248
    %v1286 = vmul.f32 %v987, %v1244
    %v1287 = vmul.f32 %v989, %v1248
    %v1288 = vmul.f32 %v993, %v1244
    %v1289 = vmul.f32 %v995, %v1248
    %v1290 = vmul.f32 %v997, %v1244
    %v1291 = vmul.f32 %v999, %v1248
    %v1292 = vmul.f32 %v1003, %v1244
    %v1293 = vmul.f32 %v1005, %v1248
    %v1294 = vmul.f32 %v1007, %v1244
    %v1295 = vmul.f32 %v1009, %v1248
    %v1296 = vmul.f32 %v1013, %v1244
    %v1297 = vmul.f32 %v1015, %v1248
    %v1298 = vmul.f32 %v1017, %v1244
    %v1299 = vmul.f32 %v1019, %v1248
    %v1300 = vmul.f32 %v1023, %v1244
    %v1301 = vmul.f32 %v1025, %v1248
    %v1302 = vmul.f32 %v1027, %v1244
    %v1303 = vmul.f32 %v1029, %v1248
    %v1305 = vlaneseq
    %v1306 = vshrl.u32 %v1305, 7
    %v1307 = vsub.s32 0, %v1306
    %v1308 = vrot.slane %v1271, %v1307
    %v1309 = vlaneseq
    %v1310 = vshrl.u32 %v1309, 7
    %v1311 = vsub.s32 1, %v1310
    %v1312 = vrot.slane %v1271, %v1311
    %v1315 = vadd.f32 %v1272, %v1308
    %v1316 = vadd.f32 %v1273, %v1312
    %v1317 = vadd.f32 %v1274, %v1308
    %v1318 = vadd.f32 %v1275, %v1312
    %v1319 = vadd.f32 %v1276, %v1308
    %v1320 = vadd.f32 %v1277, %v1312
    %v1321 = vadd.f32 %v1278, %v1308
    %v1322 = vadd.f32 %v1279, %v1312
    %v1323 = vadd.f32 %v1280, %v1308
    %v1324 = vadd.f32 %v1281, %v1312
    %v1325 = vadd.f32 %v1282, %v1308
    %v1326 = vadd.f32 %v1283, %v1312
    %v1327 = vadd.f32 %v1284, %v1308
    %v1328 = vadd.f32 %v1285, %v1312
    %v1329 = vadd.f32 %v1286, %v1308
    %v1330 = vadd.f32 %v1287, %v1312
    %v1331 = vadd.f32 %v1288, %v1308
    %v1332 = vadd.f32 %v1289, %v1312
    %v1333 = vadd.f32 %v1290, %v1308
    %v1334 = vadd.f32 %v1291, %v1312
    %v1335 = vadd.f32 %v1292, %v1308
    %v1336 = vadd.f32 %v1293, %v1312
    %v1337 = vadd.f32 %v1294, %v1308
    %v1338 = vadd.f32 %v1295, %v1312
    %v1339 = vadd.f32 %v1296, %v1308
    %v1340 = vadd.f32 %v1297, %v1312
    %v1341 = vadd.f32 %v1298, %v1308
    %v1342 = vadd.f32 %v1299, %v1312
    %v1343 = vadd.f32 %v1300, %v1308
    %v1344 = vadd.f32 %v1301, %v1312
    %v1345 = vadd.f32 %v1302, %v1308
    %v1346 = vadd.f32 %v1303, %v1312
    %v1347 = vmax.f32 %v1315, 0.0
    %v1348 = vmax.f32 %v1316, 0.0
    %v1349 = vmax.f32 %v1317, 0.0
    %v1350 = vmax.f32 %v1318, 0.0
    %v1351 = vmax.f32 %v1319, 0.0
    %v1352 = vmax.f32 %v1320, 0.0
    %v1353 = vmax.f32 %v1321, 0.0
    %v1354 = vmax.f32 %v1322, 0.0
    %v1355 = vmax.f32 %v1323, 0.0
    %v1356 = vmax.f32 %v1324, 0.0
    %v1357 = vmax.f32 %v1325, 0.0
    %v1358 = vmax.f32 %v1326, 0.0
    %v1359 = vmax.f32 %v1327, 0.0
    %v1360 = vmax.f32 %v1328, 0.0
    %v1361 = vmax.f32 %v1329, 0.0
    %v1362 = vmax.f32 %v1330, 0.0
    %v1363 = vmax.f32 %v1331, 0.0
    %v1364 = vmax.f32 %v1332, 0.0
    %v1365 = vmax.f32 %v1333, 0.0
    %v1366 = vmax.f32 %v1334, 0.0
    %v1367 = vmax.f32 %v1335, 0.0
    %v1368 = vmax.f32 %v1336, 0.0
    %v1369 = vmax.f32 %v1337, 0.0
    %v1370 = vmax.f32 %v1338, 0.0
    %v1371 = vmax.f32 %v1339, 0.0
    %v1372 = vmax.f32 %v1340, 0.0
    %v1373 = vmax.f32 %v1341, 0.0
    %v1374 = vmax.f32 %v1342, 0.0
    %v1375 = vmax.f32 %v1343, 0.0
    %v1376 = vmax.f32 %v1344, 0.0
    %v1377 = vmax.f32 %v1345, 0.0
    %v1378 = vmax.f32 %v1346, 0.0
    %v1379 = vpack.c.bf16 %v1349, %v1347
    %v1380 = vpack.c.bf16 %v1350, %v1348
    %v1381 = vpack.c.bf16 %v1353, %v1351
    %v1382 = vpack.c.bf16 %v1354, %v1352
    %v1383 = vpack.c.bf16 %v1357, %v1355
    %v1384 = vpack.c.bf16 %v1358, %v1356
    %v1385 = vpack.c.bf16 %v1361, %v1359
    %v1386 = vpack.c.bf16 %v1362, %v1360
    %v1387 = vpack.c.bf16 %v1365, %v1363
    %v1388 = vpack.c.bf16 %v1366, %v1364
    %v1389 = vpack.c.bf16 %v1369, %v1367
    %v1390 = vpack.c.bf16 %v1370, %v1368
    %v1391 = vpack.c.bf16 %v1373, %v1371
    %v1392 = vpack.c.bf16 %v1374, %v1372
    %v1393 = vpack.c.bf16 %v1377, %v1375
    %v1394 = vpack.c.bf16 %v1378, %v1376
    %v1395 = vld [vmem:[#allocation8] sm:$0xff]
    %v1396 = vld [vmem:[#allocation8 + $0x8] sm:$0xff]
    %v1397 = vld [vmem:[#allocation8 + $0x10] sm:$0xff]
    %v1398 = vld [vmem:[#allocation8 + $0x18] sm:$0xff]
    %v1399 = vld [vmem:[#allocation8 + $0x20] sm:$0xff]
    %v1400 = vld [vmem:[#allocation8 + $0x28] sm:$0xff]
    %v1401 = vld [vmem:[#allocation8 + $0x30] sm:$0xff]
    %v1402 = vld [vmem:[#allocation8 + $0x38] sm:$0xff]
    %v1403 = vld [vmem:[#allocation8 + $0x40] sm:$0xff]
    %v1404 = vld [vmem:[#allocation8 + $0x48] sm:$0xff]
    %v1405 = vld [vmem:[#allocation8 + $0x50] sm:$0xff]
    %v1406 = vld [vmem:[#allocation8 + $0x58] sm:$0xff]
    %v1407 = vld [vmem:[#allocation8 + $0x60] sm:$0xff]
    %v1408 = vld [vmem:[#allocation8 + $0x68] sm:$0xff]
    %v1409 = vld [vmem:[#allocation8 + $0x70] sm:$0xff]
    %v1410 = vld [vmem:[#allocation8 + $0x78] sm:$0xff]
    %v1411 = vld [vmem:[#allocation8 + $0x80] sm:$0xff]
    %v1412 = vld [vmem:[#allocation8 + $0x88] sm:$0xff]
    %v1413 = vld [vmem:[#allocation8 + $0x90] sm:$0xff]
    %v1414 = vld [vmem:[#allocation8 + $0x98] sm:$0xff]
    %v1415 = vld [vmem:[#allocation8 + $0xa0] sm:$0xff]
    %v1416 = vld [vmem:[#allocation8 + $0xa8] sm:$0xff]
    %v1417 = vld [vmem:[#allocation8 + $0xb0] sm:$0xff]
    %v1418 = vld [vmem:[#allocation8 + $0xb8] sm:$0xff]
    %v1419 = vld [vmem:[#allocation8 + $0xc0] sm:$0xff]
    %v1420 = vld [vmem:[#allocation8 + $0xc8] sm:$0xff]
    %v1421 = vld [vmem:[#allocation8 + $0xd0] sm:$0xff]
    %v1422 = vld [vmem:[#allocation8 + $0xd8] sm:$0xff]
    %v1423 = vld [vmem:[#allocation8 + $0xe0] sm:$0xff]
    %v1424 = vld [vmem:[#allocation8 + $0xe8] sm:$0xff]
    %v1425 = vld [vmem:[#allocation8 + $0xf0] sm:$0xff]
    %v1426 = vld [vmem:[#allocation8 + $0xf8] sm:$0xff]
    %v1427 = vld [vmem:[%s8] sm:$0x3]
    %v1429 = vlaneseq
    %v1430 = vshrl.u32 %v1429, 7
    %v1431 = vsub.s32 0, %v1430
    %v1432 = vrot.slane %v1427, %v1431
    %v1433 = vlaneseq
    %v1434 = vshrl.u32 %v1433, 7
    %v1435 = vsub.s32 1, %v1434
    %v1436 = vrot.slane %v1427, %v1435
    %v1471 = vunpack.c.l.b16 %v1395
    %v1472 = vunpack.c.h.b16 %v1395
    %v1473 = vunpack.c.l.b16 %v1396
    %v1474 = vunpack.c.h.b16 %v1396
    %v1475 = vunpack.c.l.b16 %v1397
    %v1476 = vunpack.c.h.b16 %v1397
    %v1477 = vunpack.c.l.b16 %v1398
    %v1478 = vunpack.c.h.b16 %v1398
    %v1479 = vunpack.c.l.b16 %v1399
    %v1480 = vunpack.c.h.b16 %v1399
    %v1481 = vunpack.c.l.b16 %v1400
    %v1482 = vunpack.c.h.b16 %v1400
    %v1483 = vunpack.c.l.b16 %v1401
    %v1484 = vunpack.c.h.b16 %v1401
    %v1485 = vunpack.c.l.b16 %v1402
    %v1486 = vunpack.c.h.b16 %v1402
    %v1487 = vunpack.c.l.b16 %v1403
    %v1488 = vunpack.c.h.b16 %v1403
    %v1489 = vunpack.c.l.b16 %v1404
    %v1490 = vunpack.c.h.b16 %v1404
    %v1491 = vunpack.c.l.b16 %v1405
    %v1492 = vunpack.c.h.b16 %v1405
    %v1493 = vunpack.c.l.b16 %v1406
    %v1494 = vunpack.c.h.b16 %v1406
    %v1495 = vunpack.c.l.b16 %v1407
    %v1496 = vunpack.c.h.b16 %v1407
    %v1497 = vunpack.c.l.b16 %v1408
    %v1498 = vunpack.c.h.b16 %v1408
    %v1499 = vunpack.c.l.b16 %v1409
    %v1500 = vunpack.c.h.b16 %v1409
    %v1501 = vunpack.c.l.b16 %v1410
    %v1502 = vunpack.c.h.b16 %v1410
    %v1503 = vunpack.c.l.b16 %v1411
    %v1504 = vunpack.c.h.b16 %v1411
    %v1505 = vunpack.c.l.b16 %v1412
    %v1506 = vunpack.c.h.b16 %v1412
    %v1507 = vunpack.c.l.b16 %v1413
    %v1508 = vunpack.c.h.b16 %v1413
    %v1509 = vunpack.c.l.b16 %v1414
    %v1510 = vunpack.c.h.b16 %v1414
    %v1511 = vunpack.c.l.b16 %v1415
    %v1512 = vunpack.c.h.b16 %v1415
    %v1513 = vunpack.c.l.b16 %v1416
    %v1514 = vunpack.c.h.b16 %v1416
    %v1515 = vunpack.c.l.b16 %v1417
    %v1516 = vunpack.c.h.b16 %v1417
    %v1517 = vunpack.c.l.b16 %v1418
    %v1518 = vunpack.c.h.b16 %v1418
    %v1519 = vunpack.c.l.b16 %v1419
    %v1520 = vunpack.c.h.b16 %v1419
    %v1521 = vunpack.c.l.b16 %v1420
    %v1522 = vunpack.c.h.b16 %v1420
    %v1523 = vunpack.c.l.b16 %v1421
    %v1524 = vunpack.c.h.b16 %v1421
    %v1525 = vunpack.c.l.b16 %v1422
    %v1526 = vunpack.c.h.b16 %v1422
    %v1527 = vunpack.c.l.b16 %v1423
    %v1528 = vunpack.c.h.b16 %v1423
    %v1529 = vunpack.c.l.b16 %v1424
    %v1530 = vunpack.c.h.b16 %v1424
    %v1531 = vunpack.c.l.b16 %v1425
    %v1532 = vunpack.c.h.b16 %v1425
    %v1533 = vunpack.c.l.b16 %v1426
    %v1534 = vunpack.c.h.b16 %v1426
    %v1535 = vpack.c.b16 %v1473, %v1471
    %v1536 = vpack.c.b16 %v1474, %v1472
    %v1537 = vpack.c.b16 %v1477, %v1475
    %v1538 = vpack.c.b16 %v1478, %v1476
    %v1539 = vpack.c.b16 %v1481, %v1479
    %v1540 = vpack.c.b16 %v1482, %v1480
    %v1541 = vpack.c.b16 %v1485, %v1483
    %v1542 = vpack.c.b16 %v1486, %v1484
    %v1543 = vpack.c.b16 %v1489, %v1487
    %v1544 = vpack.c.b16 %v1490, %v1488
    %v1545 = vpack.c.b16 %v1493, %v1491
    %v1546 = vpack.c.b16 %v1494, %v1492
    %v1547 = vpack.c.b16 %v1497, %v1495
    %v1548 = vpack.c.b16 %v1498, %v1496
    %v1549 = vpack.c.b16 %v1501, %v1499
    %v1550 = vpack.c.b16 %v1502, %v1500
    %v1551 = vpack.c.b16 %v1505, %v1503
    %v1552 = vpack.c.b16 %v1506, %v1504
    %v1553 = vpack.c.b16 %v1509, %v1507
    %v1554 = vpack.c.b16 %v1510, %v1508
    %v1555 = vpack.c.b16 %v1513, %v1511
    %v1556 = vpack.c.b16 %v1514, %v1512
    %v1557 = vpack.c.b16 %v1517, %v1515
    %v1558 = vpack.c.b16 %v1518, %v1516
    %v1559 = vpack.c.b16 %v1521, %v1519
    %v1560 = vpack.c.b16 %v1522, %v1520
    %v1561 = vpack.c.b16 %v1525, %v1523
    %v1562 = vpack.c.b16 %v1526, %v1524
    %v1563 = vpack.c.b16 %v1529, %v1527
    %v1564 = vpack.c.b16 %v1530, %v1528
    %v1565 = vpack.c.b16 %v1533, %v1531
    %v1566 = vpack.c.b16 %v1534, %v1532
    %1599 = vmatprep.subr.bf16.mxu0 %v1550
    %1600 = vmatpush1.bf16.msra.mxu0 %v1549
    %1601 = vmatprep.subr.bf16.mxu0 %v1548
    %1602 = vmatpush1.bf16.msra.mxu0 %v1547
    %1603 = vmatprep.subr.bf16.mxu0 %v1546
    %1604 = vmatpush1.bf16.msra.mxu0 %v1545
    %1605 = vmatprep.subr.bf16.mxu0 %v1544
    %1606 = vmatpush1.bf16.msra.mxu0 %v1543
    %1607 = vmatprep.subr.bf16.mxu0 %v1542
    %1608 = vmatpush1.bf16.msra.mxu0 %v1541
    %1609 = vmatprep.subr.bf16.mxu0 %v1540
    %1610 = vmatpush1.bf16.msra.mxu0 %v1539
    %1611 = vmatprep.subr.bf16.mxu0 %v1538
    %1612 = vmatpush1.bf16.msra.mxu0 %v1537
    %1613 = vmatprep.subr.bf16.mxu0 %v1536
    %1614 = vmatpush1.bf16.msra.mxu0 %v1535
    %1615 = vmatprep.subr.bf16.mxu0 %v1566
    %1616 = vmatpush2.bf16.msra.mxu0 %v1565
    %1617 = vmatprep.subr.bf16.mxu0 %v1564
    %1618 = vmatpush2.bf16.msra.mxu0 %v1563
    %1619 = vmatprep.subr.bf16.mxu0 %v1562
    %1620 = vmatpush2.bf16.msra.mxu0 %v1561
    %1621 = vmatprep.subr.bf16.mxu0 %v1560
    %1622 = vmatpush2.bf16.msra.mxu0 %v1559
    %1623 = vmatprep.subr.bf16.mxu0 %v1558
    %1624 = vmatpush2.bf16.msra.mxu0 %v1557
    %1625 = vmatprep.subr.bf16.mxu0 %v1556
    %1626 = vmatpush2.bf16.msra.mxu0 %v1555
    %1627 = vmatprep.subr.bf16.mxu0 %v1554
    %1628 = vmatpush2.bf16.msra.mxu0 %v1553
    %1629 = vmatprep.subr.bf16.mxu0 %v1552
    %1630 = vmatpush2.bf16.msra.mxu0 %v1551
    %1631 = vmatprep.mubr.bf16.mxu0 %v1380
    %1632 = vmatmul.mubr.bf16.gmra.mxu0 %v1379
    %v1633 = vpop.f32.mrf.mxu0
    %v1634 = vadd.f32 %v1432, %v1633
    %v1635 = vpop.f32.mrf.mxu0
    %v1636 = vadd.f32 %v1436, %v1635
    %v1637 = vpop.f32.mrf.mxu0
    %v1638 = vadd.f32 %v1432, %v1637
    %v1639 = vpop.f32.mrf.mxu0
    %v1640 = vadd.f32 %v1436, %v1639
    %1641 = vmatprep.mubr.bf16.mxu0 %v1382
    %1642 = vmatmul.mubr.bf16.gmra.mxu0 %v1381
    %v1643 = vpop.f32.mrf.mxu0
    %v1644 = vadd.f32 %v1432, %v1643
    %v1645 = vpop.f32.mrf.mxu0
    %v1646 = vadd.f32 %v1436, %v1645
    %v1647 = vpop.f32.mrf.mxu0
    %v1648 = vadd.f32 %v1432, %v1647
    %v1649 = vpop.f32.mrf.mxu0
    %v1650 = vadd.f32 %v1436, %v1649
    %1651 = vmatprep.mubr.bf16.mxu0 %v1384
    %1652 = vmatmul.mubr.bf16.gmra.mxu0 %v1383
    %v1653 = vpop.f32.mrf.mxu0
    %v1654 = vadd.f32 %v1432, %v1653
    %v1655 = vpop.f32.mrf.mxu0
    %v1656 = vadd.f32 %v1436, %v1655
    %v1657 = vpop.f32.mrf.mxu0
    %v1658 = vadd.f32 %v1432, %v1657
    %v1659 = vpop.f32.mrf.mxu0
    %v1660 = vadd.f32 %v1436, %v1659
    %1661 = vmatprep.mubr.bf16.mxu0 %v1386
    %1662 = vmatmul.mubr.bf16.gmra.mxu0 %v1385
    %v1663 = vpop.f32.mrf.mxu0
    %v1664 = vadd.f32 %v1432, %v1663
    %v1665 = vpop.f32.mrf.mxu0
    %v1666 = vadd.f32 %v1436, %v1665
    %v1667 = vpop.f32.mrf.mxu0
    %v1668 = vadd.f32 %v1432, %v1667
    %v1669 = vpop.f32.mrf.mxu0
    %v1670 = vadd.f32 %v1436, %v1669
    %1671 = vmatprep.mubr.bf16.mxu0 %v1388
    %1672 = vmatmul.mubr.bf16.gmra.mxu0 %v1387
    %v1673 = vpop.f32.mrf.mxu0
    %v1674 = vadd.f32 %v1432, %v1673
    %v1675 = vpop.f32.mrf.mxu0
    %v1676 = vadd.f32 %v1436, %v1675
    %v1677 = vpop.f32.mrf.mxu0
    %v1678 = vadd.f32 %v1432, %v1677
    %v1679 = vpop.f32.mrf.mxu0
    %v1680 = vadd.f32 %v1436, %v1679
    %1681 = vmatprep.mubr.bf16.mxu0 %v1390
    %1682 = vmatmul.mubr.bf16.gmra.mxu0 %v1389
    %v1683 = vpop.f32.mrf.mxu0
    %v1684 = vadd.f32 %v1432, %v1683
    %v1685 = vpop.f32.mrf.mxu0
    %v1686 = vadd.f32 %v1436, %v1685
    %v1687 = vpop.f32.mrf.mxu0
    %v1688 = vadd.f32 %v1432, %v1687
    %v1689 = vpop.f32.mrf.mxu0
    %v1690 = vadd.f32 %v1436, %v1689
    %1691 = vmatprep.mubr.bf16.mxu0 %v1392
    %1692 = vmatmul.mubr.bf16.gmra.mxu0 %v1391
    %v1693 = vpop.f32.mrf.mxu0
    %v1694 = vadd.f32 %v1432, %v1693
    %v1695 = vpop.f32.mrf.mxu0
    %v1696 = vadd.f32 %v1436, %v1695
    %v1697 = vpop.f32.mrf.mxu0
    %v1698 = vadd.f32 %v1432, %v1697
    %v1699 = vpop.f32.mrf.mxu0
    %v1700 = vadd.f32 %v1436, %v1699
    %1701 = vmatprep.mubr.bf16.mxu0 %v1394
    %1702 = vmatmul.mubr.bf16.gmra.mxu0 %v1393
    %v1703 = vpop.f32.mrf.mxu0
    %v1704 = vadd.f32 %v1432, %v1703
    %v1705 = vpop.f32.mrf.mxu0
    %v1706 = vadd.f32 %v1436, %v1705
    %v1707 = vpop.f32.mrf.mxu0
    %v1708 = vadd.f32 %v1432, %v1707
    %v1709 = vpop.f32.mrf.mxu0
    %v1710 = vadd.f32 %v1436, %v1709
    %1711 = vdwg.mxu0
    %1712 = vst [vmem:[#allocation10] sm:$0xff] %v1634
    %1713 = vst [vmem:[#allocation10 + $0x8] sm:$0xff] %v1636
    %1714 = vst [vmem:[#allocation10 + $0x10] sm:$0xff] %v1638
    %1715 = vst [vmem:[#allocation10 + $0x18] sm:$0xff] %v1640
    %1716 = vst [vmem:[#allocation10 + $0x20] sm:$0xff] %v1644
    %1717 = vst [vmem:[#allocation10 + $0x28] sm:$0xff] %v1646
    %1718 = vst [vmem:[#allocation10 + $0x30] sm:$0xff] %v1648
    %1719 = vst [vmem:[#allocation10 + $0x38] sm:$0xff] %v1650
    %1720 = vst [vmem:[#allocation10 + $0x40] sm:$0xff] %v1654
    %1721 = vst [vmem:[#allocation10 + $0x48] sm:$0xff] %v1656
    %1722 = vst [vmem:[#allocation10 + $0x50] sm:$0xff] %v1658
    %1723 = vst [vmem:[#allocation10 + $0x58] sm:$0xff] %v1660
    %1724 = vst [vmem:[#allocation10 + $0x60] sm:$0xff] %v1664
    %1725 = vst [vmem:[#allocation10 + $0x68] sm:$0xff] %v1666
    %1726 = vst [vmem:[#allocation10 + $0x70] sm:$0xff] %v1668
    %1727 = vst [vmem:[#allocation10 + $0x78] sm:$0xff] %v1670
    %1728 = vst [vmem:[#allocation10 + $0x80] sm:$0xff] %v1674
    %1729 = vst [vmem:[#allocation10 + $0x88] sm:$0xff] %v1676
    %1730 = vst [vmem:[#allocation10 + $0x90] sm:$0xff] %v1678
    %1731 = vst [vmem:[#allocation10 + $0x98] sm:$0xff] %v1680
    %1732 = vst [vmem:[#allocation10 + $0xa0] sm:$0xff] %v1684
    %1733 = vst [vmem:[#allocation10 + $0xa8] sm:$0xff] %v1686
    %1734 = vst [vmem:[#allocation10 + $0xb0] sm:$0xff] %v1688
    %1735 = vst [vmem:[#allocation10 + $0xb8] sm:$0xff] %v1690
    %1736 = vst [vmem:[#allocation10 + $0xc0] sm:$0xff] %v1694
    %1737 = vst [vmem:[#allocation10 + $0xc8] sm:$0xff] %v1696
    %1738 = vst [vmem:[#allocation10 + $0xd0] sm:$0xff] %v1698
    %1739 = vst [vmem:[#allocation10 + $0xd8] sm:$0xff] %v1700
    %1740 = vst [vmem:[#allocation10 + $0xe0] sm:$0xff] %v1704
    %1741 = vst [vmem:[#allocation10 + $0xe8] sm:$0xff] %v1706
    %1742 = vst [vmem:[#allocation10 + $0xf0] sm:$0xff] %v1708
    %1743 = vst [vmem:[#allocation10 + $0xf8] sm:$0xff] %v1710
    // Predicated region
    $region54: #{tpu_custom_call.1} parent=1 // pred_check
      _
    $region55: #{tpu_custom_call.1} parent=1 // pred_check_branch
      %1745 = sbr.rel (0) target = $region57
    $region56: #{tpu_custom_call.1} parent=1 // pred_region
      %s1747 = ssub.s32 4096, 4096
      %1748 = vsyncadd [#allocation4], %s1747
      %s1749 = sshll.u32 [#allocation10], 4
      %s1750 = int_to_ptr.vmem [resolvable:$true] %s1749
      %1755 = dma.vmem_to_hbm [thread:$0]  %s1750, 4096, %s9, [#allocation4], 256, 256, 16
    $region57: #{tpu_custom_call.1} parent=1 // pred_fallthru
      _
    // Predicated region
    $region58: #{tpu_custom_call.1} parent=1 // pred_check
      _
    $region59: #{tpu_custom_call.1} parent=1 // pred_check_branch
      %1757 = sbr.rel (0) target = $region61
    $region60: #{tpu_custom_call.1} parent=1 // pred_region
      %1758 = dma.done [#allocation4], 4096
    $region61: #{tpu_custom_call.1} parent=1 // pred_fallthru
      _
    %1759 = vsyncpa [#allocation3], 1
    %1760 = vsyncpa [#allocation6], 1
    %1761 = vsyncpa [#allocation9], 1
    %1762 = vsyncpa [#allocation4], 1

</llo_original>
